<compile_context>
chip_gen: v7x
topology: tpu7x:2x2x1
jax: 0.10.0
libtpu: 0.0.40
codegen_flags: <defaults>
</compile_context>

<pallas_src>
import functools

import jax
import jax.numpy as jnp
from jax import lax
from jax.experimental import pallas as pl
from jax.experimental.pallas import tpu as pltpu


# ----------------------------- VMEM budgeting ------------------------------
def _ceil_to(v, m):
    return (v + m - 1) // m * m


def _padded_bytes(shape, itemsize):
    """Rough VMEM footprint of one buffer after (sublane, lane) tile padding."""
    s = [int(d) for d in shape]
    if not s:
        return itemsize
    if len(s) == 1:
        s = [1, s[0]]
    sub = 8 * (4 // itemsize)        # 8 sublanes for f32, 16 for bf16
    lead = 1
    for d in s[:-2]:
        lead *= d
    return lead * _ceil_to(s[-2], sub) * _ceil_to(s[-1], 128) * itemsize


def _vmem_limit(blocks_bytes, extra_bytes):
    est = 2 * blocks_bytes + extra_bytes          # double-buffered blocks
    return int(min(max(32 << 20, 2 * est), 64 << 20))


# --------------------- Pass 1: conv + bias + IN + ReLU ---------------------
def _conv_fused_kernel(x_ref, w_ref, b_ref, *refs, KH, KW, pad, bn_c, in_start,
                       eps, with_ibn, with_relu):
    # x_ref: (1, H, W, Cin) bf16 unpadded image
    # w_ref: (Cout, KH*KW*Cin) bf16, columns ordered (kh, kw, cin)
    # b_ref: (Cout, 1) f32
    # refs:  y_ref (1, c_out, HW) f32
    #        [+ st_ref (1, bn_c, 2) f32 packed per-image BN sum / sumsq]
    #        [+ xpad_ref (Hp, Wp, Cin) bf16 scratch, only when pad > 0]
    refs = list(refs)
    y_ref = refs.pop(0)
    st_ref = refs.pop(0) if with_ibn else None
    xpad_ref = refs.pop(0) if pad > 0 else None

    _, H, W, Cin = x_ref.shape
    Hp, Wp = H + 2 * pad, W + 2 * pad
    Ho, Wo = Hp - KH + 1, Wp - KW + 1
    HW = Ho * Wo

    if pad > 0:
        # Zero only the pad border; the interior is written exactly once.
        zrow = jnp.zeros((pad, Wp, Cin), x_ref.dtype)
        zcol = jnp.zeros((H, pad, Cin), x_ref.dtype)
        xpad_ref[:pad, :, :] = zrow
        xpad_ref[pad + H:, :, :] = zrow
        xpad_ref[pad:pad + H, :pad, :] = zcol
        xpad_ref[pad:pad + H, pad + W:, :] = zcol
        xpad_ref[pad:pad + H, pad:pad + W, :] = x_ref[0]
        xp = xpad_ref[...]
    else:
        xp = x_ref[0]

    # im2col patch (HW, KH*KW*Cin): concat along the last (lane) axis, then
    # collapse the two leading spatial dims (a free leading-dim reshape).
    taps = []
    for kh in range(KH):
        for kw in range(KW):
            taps.append(xp[kh:kh + Ho, kw:kw + Wo, :])
    patch = jnp.concatenate(taps, axis=-1).reshape(HW, KH * KW * Cin)

    # MXU: (Cout, KKC) x (HW, KKC)^T -> (Cout, HW).  Contraction over the last
    # dim of both operands (same pattern as q @ k.T): lane-dense, channel-major
    # result, no output transpose, bias broadcast along lanes for free.
    # bf16 operands, f32 accumulation.
    acc = lax.dot_general(w_ref[...], patch,
                          dimension_numbers=(((1,), (1,)), ((), ())),
                          preferred_element_type=jnp.float32)   # (Cout, HW)
    y = acc + b_ref[...]

    if not with_ibn:
        if with_relu:
            y = jnp.maximum(y, 0.0)
        y_ref[0] = y
        return

    bn_raw = y[:bn_c, :]      # BatchNorm half: normalized in pass 2
    in_x = y[in_start:, :]    # InstanceNorm half: finalized here (per-image)

    inv_hw = 1.0 / HW
    in_mean = jnp.sum(in_x, axis=1, keepdims=True) * inv_hw
    in_var = jnp.sum(in_x * in_x, axis=1, keepdims=True) * inv_hw \
        - in_mean * in_mean
    in_var = jnp.maximum(in_var, 0.0)          # one-pass var can go slightly <0
    in_out = (in_x - in_mean) * lax.rsqrt(in_var + eps)
    if with_relu:
        in_out = jnp.maximum(in_out, 0.0)

    # Write both halves straight into output sub-slices (no concat copy).
    y_ref[0, :bn_c, :] = bn_raw
    y_ref[0, bn_c:, :] = in_out

    # One packed per-image BN stats side output instead of two tiny streams.
    s = jnp.sum(bn_raw, axis=1, keepdims=True)
    sq = jnp.sum(bn_raw * bn_raw, axis=1, keepdims=True)
    st_ref[0] = jnp.concatenate([s, sq], axis=1)               # (bn_c, 2)


# ---------------- Pass 2: apply BatchNorm scale/shift (+ ReLU) -------------
def _bn_apply_slim_kernel(y_ref, sc_ref, sh_ref, o_ref, *, with_relu):
    # Blocks cover ONLY the BN channels; the IN half is never read or written
    # (it is preserved through the aliased output buffer).
    bn = y_ref[0] * sc_ref[...] + sh_ref[...]
    if with_relu:
        bn = jnp.maximum(bn, 0.0)
    o_ref[0] = bn


def _bn_apply_full_kernel(y_ref, sc_ref, sh_ref, o_ref, *, bn_c, with_relu):
    # Fallback when bn_c is not sublane-aligned: full-channel block, IN half
    # passes through via sub-slice stores (no concat copy).
    y = y_ref[0]
    bn = y[:bn_c, :] * sc_ref[...] + sh_ref[...]
    if with_relu:
        bn = jnp.maximum(bn, 0.0)
    o_ref[0, :bn_c, :] = bn
    o_ref[0, bn_c:, :] = y[bn_c:, :]


# -------------------------------- Wrapper ----------------------------------
def conv2d_ibnorm_relu(x_nchw, weight, bias=None, gamma=None, beta=None, *,
                       stride=1, padding=0, dilation=1, groups=1,
                       with_ibn=True, with_relu=True, eps=1e-5):
    """x_nchw: (N, Cin, H, W); weight: (Cout, Cin, KH, KW); bias: (Cout,).

    Note: for odd Cout with with_ibn=True the module (and this kernel) emits
    Cout-1 channels and drops channel bn_c, faithful to the PyTorch slicing.
    """
    # TODO(synk): general stride / dilation / groups are not implemented.
    assert stride == 1 and dilation == 1 and groups == 1
    N, Cin, H, W = x_nchw.shape
    Cout, _, KH, KW = weight.shape
    Hp, Wp = H + 2 * padding, W + 2 * padding
    Ho, Wo = Hp - KH + 1, Wp - KW + 1
    HW = Ho * Wo
    KKC = KH * KW * Cin

    bn_c = int(Cout / 2)            # IBNorm.bnorm_channels
    in_start = Cout - bn_c          # IBNorm.inorm_channels (slice start)
    in_c = Cout - in_start
    c_out = (bn_c + in_c) if with_ibn else Cout
    if with_ibn:
        assert bn_c >= 1, "IBNorm needs at least 2 output channels"

    # NCHW -> NHWC (small input only; the kernel output is already channel-
    # major NCHW, so no output transpose is ever needed).  bf16 operands.
    x_nhwc = jnp.transpose(x_nchw, (0, 2, 3, 1)).astype(jnp.bfloat16)
    # OIHW -> (Cout, KH*KW*Cin), columns ordered (kh, kw, cin) to match im2col.
    w2d = jnp.transpose(weight, (0, 2, 3, 1)).reshape(Cout, KKC) \
        .astype(jnp.bfloat16)
    if bias is None:
        bias = jnp.zeros((Cout,), jnp.float32)
    b2 = bias.reshape(Cout, 1).astype(jnp.float32)

    kern1 = functools.partial(
        _conv_fused_kernel, KH=KH, KW=KW, pad=padding, bn_c=bn_c,
        in_start=in_start, eps=eps, with_ibn=with_ibn, with_relu=with_relu)

    y_shape = jax.ShapeDtypeStruct((N, c_out, HW), jnp.float32)
    y_spec = pl.BlockSpec((1, c_out, HW), lambda n: (n, 0, 0))
    if with_ibn:
        out_shape1 = (y_shape, jax.ShapeDtypeStruct((N, bn_c, 2), jnp.float32))
        out_specs1 = (y_spec, pl.BlockSpec((1, bn_c, 2), lambda n: (n, 0, 0)))
    else:
        out_shape1 = y_shape
        out_specs1 = y_spec

    scratch1 = []
    if padding > 0:
        scratch1.append(pltpu.VMEM((Hp, Wp, Cin), jnp.bfloat16))

    blk1 = (_padded_bytes((H, W, Cin), 2) + _padded_bytes((Cout, KKC), 2)
            + _padded_bytes((Cout, 1), 4) + _padded_bytes((c_out, HW), 4)
            + _padded_bytes((bn_c, 2), 4))
    extra1 = (_padded_bytes((Hp, Wp, Cin), 2) + _padded_bytes((HW, KKC), 2)
              + 2 * _padded_bytes((c_out, HW), 4))

    res = pl.pallas_call(
        kern1,
        out_shape=out_shape1,
        grid=(N,),
        in_specs=[
            pl.BlockSpec((1, H, W, Cin), lambda n: (n, 0, 0, 0)),
            pl.BlockSpec((Cout, KKC), lambda n: (0, 0)),
            pl.BlockSpec((Cout, 1), lambda n: (0, 0)),
        ],
        out_specs=out_specs1,
        scratch_shapes=scratch1,
        # TODO(synk): for large images, add a spatial band grid axis with a
        # KH-1 row halo (plus per-band IN partial sums) and pack Cin into the
        # lane dim to bound VMEM on v7x (64 MiB/TC) and avoid the small-Cin
        # lane-padding blowup of the NHWC input / padded-image scratch.
        # TODO(synk): for tiny images, process several images per grid step
        # to amortize the ~0.35us per-step pipeline overhead.
        compiler_params=pltpu.CompilerParams(
            dimension_semantics=("parallel",),
            vmem_limit_bytes=_vmem_limit(blk1, extra1)),
    )(x_nhwc, w2d, b2)

    if not with_ibn:
        return res.reshape(N, Cout, Ho, Wo)

    y1, stats = res

    # BatchNorm scale/shift: a bn_c-length reduction done once in plain JAX
    # (not redundantly per pass-2 grid step).  Biased variance, clamped.
    if gamma is None:
        gamma = jnp.ones((bn_c,), jnp.float32)
    if beta is None:
        beta = jnp.zeros((bn_c,), jnp.float32)
    tot = jnp.sum(stats, axis=0)                     # (bn_c, 2)
    count = float(N * HW)
    mean = tot[:, 0] / count
    var = jnp.maximum(tot[:, 1] / count - mean * mean, 0.0)
    scale = gamma.astype(jnp.float32) * lax.rsqrt(var + eps)
    shift = beta.astype(jnp.float32) - mean * scale
    sc2 = scale.reshape(bn_c, 1)
    sh2 = shift.reshape(bn_c, 1)

    slim = (bn_c % 8 == 0)     # channel block must stay sublane-aligned
    if slim:
        kern2 = functools.partial(_bn_apply_slim_kernel, with_relu=with_relu)
        y_spec2 = pl.BlockSpec((1, bn_c, HW), lambda n: (n, 0, 0))
        touched_c = bn_c
    else:
        kern2 = functools.partial(_bn_apply_full_kernel, bn_c=bn_c,
                                  with_relu=with_relu)
        y_spec2 = pl.BlockSpec((1, c_out, HW), lambda n: (n, 0, 0))
        touched_c = c_out

    blk2 = 2 * _padded_bytes((touched_c, HW), 4) + 2 * _padded_bytes((bn_c, 1), 4)

    y2 = pl.pallas_call(
        kern2,
        out_shape=jax.ShapeDtypeStruct((N, c_out, HW), jnp.float32),
        grid=(N,),
        in_specs=[
            y_spec2,
            pl.BlockSpec((bn_c, 1), lambda n: (0, 0)),
            pl.BlockSpec((bn_c, 1), lambda n: (0, 0)),
        ],
        out_specs=y_spec2,
        # Rewrite the pass-1 buffer in place; with the slim block only the BN
        # half is ever read/written and the IN half survives via the alias.
        input_output_aliases={0: 0},
        compiler_params=pltpu.CompilerParams(
            dimension_semantics=("parallel",),
            vmem_limit_bytes=_vmem_limit(blk2, 0)),
    )(y1, sc2, sh2)

    # Channel-major (N, C, Ho*Wo) is already NCHW; the reshape is free.
    return y2.reshape(N, c_out, Ho, Wo)


# ------------------------------- Reference ---------------------------------
def _reference(x, weight, bias, gamma, beta, *, padding, eps=1e-5,
               with_ibn=True, with_relu=True):
    y = lax.conv_general_dilated(
        x.astype(jnp.float32), weight.astype(jnp.float32),
        window_strides=(1, 1), padding=[(padding, padding)] * 2,
        dimension_numbers=("NCHW", "OIHW", "NCHW"))
    y = y + bias[None, :, None, None]
    if with_ibn:
        C = y.shape[1]
        bn_c = int(C / 2)
        in_start = C - bn_c
        bn = y[:, :bn_c]
        m = jnp.mean(bn, axis=(0, 2, 3), keepdims=True)
        v = jnp.mean((bn - m) ** 2, axis=(0, 2, 3), keepdims=True)
        bn_o = (bn - m) * lax.rsqrt(v + eps) * gamma[None, :, None, None] \
            + beta[None, :, None, None]
        ix = y[:, in_start:]
        mi = jnp.mean(ix, axis=(2, 3), keepdims=True)
        vi = jnp.mean((ix - mi) ** 2, axis=(2, 3), keepdims=True)
        in_o = (ix - mi) * lax.rsqrt(vi + eps)
        y = jnp.concatenate([bn_o, in_o], axis=1)
    if with_relu:
        y = jnp.maximum(y, 0.0)
    return y


if __name__ == "__main__":
    def run_case(name, *, N=2, Cin=4, H=16, W=16, Cout=8, K=3, pad=1,
                 with_ibn=True, with_relu=True):
        key = jax.random.PRNGKey(0)
        k1, k2, k3, k4, k5 = jax.random.split(key, 5)
        x = jax.random.normal(k1, (N, Cin, H, W), jnp.float32)
        weight = jax.random.normal(k2, (Cout, Cin, K, K), jnp.float32) * 0.1
        bias = jax.random.normal(k3, (Cout,), jnp.float32) * 0.1
        bn_c = int(Cout / 2)
        gamma = 1.0 + 0.1 * jax.random.normal(k4, (bn_c,), jnp.float32)
        beta = 0.1 * jax.random.normal(k5, (bn_c,), jnp.float32)

        out = conv2d_ibnorm_relu(x, weight, bias, gamma, beta, padding=pad,
                                 with_ibn=with_ibn, with_relu=with_relu)
        out = jax.block_until_ready(out)
        ref = _reference(x, weight, bias, gamma, beta, padding=pad,
                         with_ibn=with_ibn, with_relu=with_relu)
        assert out.shape == ref.shape, (name, out.shape, ref.shape)
        err = float(jnp.max(jnp.abs(out - ref)))
        # bf16 MXU operands (f32 accumulation) vs. the pure-f32 reference.
        assert jnp.allclose(out, ref, atol=3e-2, rtol=3e-2), (name, err)

    # Conv2dIBNormRelu(4, 8, 3, stride=1, padding=1): conv + IBNorm + ReLU.
    run_case("ibn_relu_c8")
    # Wider output (bn_c multiple of 8) exercises the slim BN-only pass 2.
    run_case("ibn_relu_c32", Cout=32)
    # with_relu=False and with_ibn=False paths.
    run_case("ibn_only", with_relu=False)
    run_case("conv_relu_only", with_ibn=False)
    # 1x1 conv, no padding (no padded-image scratch).
    run_case("ibn_relu_1x1", K=1, pad=0)

    print("KERNEL_OK")
</pallas_src>

<mosaic_0001>
module attributes {stable_mosaic.version = 11 : i64} {
  func.func @_conv_fused_kernel(%arg0: i32, %arg1: memref<1x16x16x4xbf16, #tpu.memory_space<vmem>>, %arg2: memref<8x36xbf16, #tpu.memory_space<vmem>>, %arg3: memref<8x1xf32, #tpu.memory_space<vmem>>, %arg4: memref<1x8x256xf32, #tpu.memory_space<vmem>>, %arg5: memref<1x4x2xf32, #tpu.memory_space<vmem>>, %arg6: memref<18x18x4xbf16, #tpu.memory_space<vmem>>) attributes {dimension_semantics = [#tpu.dimension_semantics<parallel>], iteration_bounds = array<i64: 2>, scalar_prefetch = 0 : i64, scratch_operands = 1 : i64, tpu.core_type = #tpu.core_type<tc>, window_params = [{transform_indices = @transform_0, window_bounds = array<i64: 1, 16, 16, 4>}, {pipeline_mode = #tpu.pipeline_mode<synchronous>, transform_indices = @transform_1, window_bounds = array<i64: 8, 36>}, {pipeline_mode = #tpu.pipeline_mode<synchronous>, transform_indices = @transform_2, window_bounds = array<i64: 8, 1>}, {transform_indices = @transform_3, window_bounds = array<i64: 1, 8, 256>}, {transform_indices = @transform_4, window_bounds = array<i64: 1, 4, 2>}]} {
    %cst = arith.constant 0.000000e+00 : bf16
    %0 = vector.broadcast %cst : bf16 to vector<1x18x4xbf16>
    %cst_0 = arith.constant 0.000000e+00 : bf16
    %1 = vector.broadcast %cst_0 : bf16 to vector<16x1x4xbf16>
    %c0 = arith.constant 0 : index
    %c0_1 = arith.constant 0 : index
    %c0_2 = arith.constant 0 : index
    %2 = vector.load %arg6[%c0, %c0_1, %c0_2] : memref<18x18x4xbf16, #tpu.memory_space<vmem>>, vector<1x18x4xbf16>
    tpu.vector_store %arg6[%c0, %c0_1, %c0_2], %0 {strides = array<i32>} : memref<18x18x4xbf16, #tpu.memory_space<vmem>>, vector<1x18x4xbf16>,
    %c17 = arith.constant 17 : index
    %c0_3 = arith.constant 0 : index
    %c0_4 = arith.constant 0 : index
    %3 = vector.load %arg6[%c17, %c0_3, %c0_4] : memref<18x18x4xbf16, #tpu.memory_space<vmem>>, vector<1x18x4xbf16>
    tpu.vector_store %arg6[%c17, %c0_3, %c0_4], %0 {strides = array<i32>} : memref<18x18x4xbf16, #tpu.memory_space<vmem>>, vector<1x18x4xbf16>,
    %c1 = arith.constant 1 : index
    %c0_5 = arith.constant 0 : index
    %c0_6 = arith.constant 0 : index
    %4 = vector.load %arg6[%c1, %c0_5, %c0_6] : memref<18x18x4xbf16, #tpu.memory_space<vmem>>, vector<16x1x4xbf16>
    tpu.vector_store %arg6[%c1, %c0_5, %c0_6], %1 {strides = array<i32>} : memref<18x18x4xbf16, #tpu.memory_space<vmem>>, vector<16x1x4xbf16>,
    %c1_7 = arith.constant 1 : index
    %c17_8 = arith.constant 17 : index
    %c0_9 = arith.constant 0 : index
    %5 = vector.load %arg6[%c1_7, %c17_8, %c0_9] : memref<18x18x4xbf16, #tpu.memory_space<vmem>>, vector<16x1x4xbf16>
    tpu.vector_store %arg6[%c1_7, %c17_8, %c0_9], %1 {strides = array<i32>} : memref<18x18x4xbf16, #tpu.memory_space<vmem>>, vector<16x1x4xbf16>,
    %c0_10 = arith.constant 0 : index
    %c0_11 = arith.constant 0 : index
    %c0_12 = arith.constant 0 : index
    %c0_13 = arith.constant 0 : index
    %6 = vector.load %arg1[%c0_10, %c0_11, %c0_12, %c0_13] : memref<1x16x16x4xbf16, #tpu.memory_space<vmem>>, vector<1x16x16x4xbf16>
    %7 = vector.shape_cast %6 : vector<1x16x16x4xbf16> to vector<16x16x4xbf16>
    %c1_14 = arith.constant 1 : index
    %c1_15 = arith.constant 1 : index
    %c0_16 = arith.constant 0 : index
    %8 = vector.load %arg6[%c1_14, %c1_15, %c0_16] : memref<18x18x4xbf16, #tpu.memory_space<vmem>>, vector<16x16x4xbf16>
    tpu.vector_store %arg6[%c1_14, %c1_15, %c0_16], %7 {strides = array<i32>} : memref<18x18x4xbf16, #tpu.memory_space<vmem>>, vector<16x16x4xbf16>,
    %c0_17 = arith.constant 0 : index
    %c0_18 = arith.constant 0 : index
    %c0_19 = arith.constant 0 : index
    %9 = vector.load %arg6[%c0_17, %c0_18, %c0_19] : memref<18x18x4xbf16, #tpu.memory_space<vmem>>, vector<18x18x4xbf16>
    %10 = vector.extract_strided_slice %9 {offsets = [0, 0, 0], sizes = [16, 16, 4], strides = [1, 1, 1]} : vector<18x18x4xbf16> to vector<16x16x4xbf16>
    %11 = vector.extract_strided_slice %9 {offsets = [0, 1, 0], sizes = [16, 16, 4], strides = [1, 1, 1]} : vector<18x18x4xbf16> to vector<16x16x4xbf16>
    %12 = vector.extract_strided_slice %9 {offsets = [0, 2, 0], sizes = [16, 16, 4], strides = [1, 1, 1]} : vector<18x18x4xbf16> to vector<16x16x4xbf16>
    %13 = vector.extract_strided_slice %9 {offsets = [1, 0, 0], sizes = [16, 16, 4], strides = [1, 1, 1]} : vector<18x18x4xbf16> to vector<16x16x4xbf16>
    %14 = vector.extract_strided_slice %9 {offsets = [1, 1, 0], sizes = [16, 16, 4], strides = [1, 1, 1]} : vector<18x18x4xbf16> to vector<16x16x4xbf16>
    %15 = vector.extract_strided_slice %9 {offsets = [1, 2, 0], sizes = [16, 16, 4], strides = [1, 1, 1]} : vector<18x18x4xbf16> to vector<16x16x4xbf16>
    %16 = vector.extract_strided_slice %9 {offsets = [2, 0, 0], sizes = [16, 16, 4], strides = [1, 1, 1]} : vector<18x18x4xbf16> to vector<16x16x4xbf16>
    %17 = vector.extract_strided_slice %9 {offsets = [2, 1, 0], sizes = [16, 16, 4], strides = [1, 1, 1]} : vector<18x18x4xbf16> to vector<16x16x4xbf16>
    %18 = vector.extract_strided_slice %9 {offsets = [2, 2, 0], sizes = [16, 16, 4], strides = [1, 1, 1]} : vector<18x18x4xbf16> to vector<16x16x4xbf16>
    %19 = tpu.concatenate %10, %11, %12, %13, %14, %15, %16, %17, %18 in 2 : vector<16x16x4xbf16>, vector<16x16x4xbf16>, vector<16x16x4xbf16>, vector<16x16x4xbf16>, vector<16x16x4xbf16>, vector<16x16x4xbf16>, vector<16x16x4xbf16>, vector<16x16x4xbf16>, vector<16x16x4xbf16> -> vector<16x16x36xbf16>
    %20 = vector.shape_cast %19 : vector<16x16x36xbf16> to vector<256x36xbf16>
    %c0_20 = arith.constant 0 : index
    %c0_21 = arith.constant 0 : index
    %21 = vector.load %arg2[%c0_20, %c0_21] : memref<8x36xbf16, #tpu.memory_space<vmem>>, vector<8x36xbf16>
    %cst_22 = arith.constant dense<0.000000e+00> : vector<8x256xf32>
    %22 = tpu.matmul %21, %20, %cst_22 {dimension_numbers = #tpu.dot_dimension_numbers<[1], [1], [0], [0], [0, 0, 1, 0], [], []>} : vector<8x36xbf16>, vector<256x36xbf16>, vector<8x256xf32> -> vector<8x256xf32>
    %c0_23 = arith.constant 0 : index
    %c0_24 = arith.constant 0 : index
    %23 = vector.load %arg3[%c0_23, %c0_24] : memref<8x1xf32, #tpu.memory_space<vmem>>, vector<8x1xf32>
    %24 = vector.broadcast %23 : vector<8x1xf32> to vector<8x256xf32>
    %25 = arith.addf %22, %24 : vector<8x256xf32>
    %26 = vector.extract_strided_slice %25 {offsets = [0, 0], sizes = [4, 256], strides = [1, 1]} : vector<8x256xf32> to vector<4x256xf32>
    %27 = vector.extract_strided_slice %25 {offsets = [4, 0], sizes = [4, 256], strides = [1, 1]} : vector<8x256xf32> to vector<4x256xf32>
    %cst_25 = arith.constant dense<0.000000e+00> : vector<4xf32>
    %28 = vector.multi_reduction <add>, %27, %cst_25 [1] : vector<4x256xf32> to vector<4xf32>
    %29 = vector.shape_cast %28 : vector<4xf32> to vector<4x1xf32>
    %cst_26 = arith.constant 3.906250e-03 : f32
    %30 = vector.broadcast %cst_26 : f32 to vector<4x1xf32>
    %31 = arith.mulf %29, %30 : vector<4x1xf32>
    %32 = arith.mulf %27, %27 : vector<4x256xf32>
    %cst_27 = arith.constant dense<0.000000e+00> : vector<4xf32>
    %33 = vector.multi_reduction <add>, %32, %cst_27 [1] : vector<4x256xf32> to vector<4xf32>
    %34 = vector.shape_cast %33 : vector<4xf32> to vector<4x1xf32>
    %cst_28 = arith.constant 3.906250e-03 : f32
    %35 = vector.broadcast %cst_28 : f32 to vector<4x1xf32>
    %36 = arith.mulf %34, %35 : vector<4x1xf32>
    %37 = arith.mulf %31, %31 : vector<4x1xf32>
    %38 = arith.subf %36, %37 : vector<4x1xf32>
    %cst_29 = arith.constant 0.000000e+00 : f32
    %39 = vector.broadcast %cst_29 : f32 to vector<4x1xf32>
    %40 = arith.maximumf %38, %39 : vector<4x1xf32>
    %41 = vector.broadcast %31 : vector<4x1xf32> to vector<4x256xf32>
    %42 = arith.subf %27, %41 : vector<4x256xf32>
    %cst_30 = arith.constant 9.99999974E-6 : f32
    %43 = vector.broadcast %cst_30 : f32 to vector<4x1xf32>
    %44 = arith.addf %40, %43 : vector<4x1xf32>
    %45 = math.rsqrt %44 : vector<4x1xf32>
    %46 = vector.broadcast %45 : vector<4x1xf32> to vector<4x256xf32>
    %47 = arith.mulf %42, %46 : vector<4x256xf32>
    %cst_31 = arith.constant 0.000000e+00 : f32
    %48 = vector.broadcast %cst_31 : f32 to vector<4x256xf32>
    %49 = arith.maximumf %47, %48 : vector<4x256xf32>
    %c0_32 = arith.constant 0 : index
    %c0_33 = arith.constant 0 : index
    %c0_34 = arith.constant 0 : index
    %50 = vector.load %arg4[%c0_32, %c0_33, %c0_34] : memref<1x8x256xf32, #tpu.memory_space<vmem>>, vector<1x4x256xf32>
    %51 = vector.shape_cast %50 : vector<1x4x256xf32> to vector<4x256xf32>
    %52 = vector.shape_cast %26 : vector<4x256xf32> to vector<1x4x256xf32>
    tpu.vector_store %arg4[%c0_32, %c0_33, %c0_34], %52 {strides = array<i32>} : memref<1x8x256xf32, #tpu.memory_space<vmem>>, vector<1x4x256xf32>,
    %c0_35 = arith.constant 0 : index
    %c4 = arith.constant 4 : index
    %c0_36 = arith.constant 0 : index
    %53 = vector.load %arg4[%c0_35, %c4, %c0_36] : memref<1x8x256xf32, #tpu.memory_space<vmem>>, vector<1x4x256xf32>
    %54 = vector.shape_cast %53 : vector<1x4x256xf32> to vector<4x256xf32>
    %55 = vector.shape_cast %49 : vector<4x256xf32> to vector<1x4x256xf32>
    tpu.vector_store %arg4[%c0_35, %c4, %c0_36], %55 {strides = array<i32>} : memref<1x8x256xf32, #tpu.memory_space<vmem>>, vector<1x4x256xf32>,
    %cst_37 = arith.constant dense<0.000000e+00> : vector<4xf32>
    %56 = vector.multi_reduction <add>, %26, %cst_37 [1] : vector<4x256xf32> to vector<4xf32>
    %57 = vector.shape_cast %56 : vector<4xf32> to vector<4x1xf32>
    %58 = arith.mulf %26, %26 : vector<4x256xf32>
    %cst_38 = arith.constant dense<0.000000e+00> : vector<4xf32>
    %59 = vector.multi_reduction <add>, %58, %cst_38 [1] : vector<4x256xf32> to vector<4xf32>
    %60 = vector.shape_cast %59 : vector<4xf32> to vector<4x1xf32>
    %61 = tpu.concatenate %57, %60 in 1 : vector<4x1xf32>, vector<4x1xf32> -> vector<4x2xf32>
    %c0_39 = arith.constant 0 : index
    %c0_40 = arith.constant 0 : index
    %c0_41 = arith.constant 0 : index
    %62 = vector.load %arg5[%c0_39, %c0_40, %c0_41] : memref<1x4x2xf32, #tpu.memory_space<vmem>>, vector<1x4x2xf32>
    %63 = vector.shape_cast %62 : vector<1x4x2xf32> to vector<4x2xf32>
    %64 = vector.shape_cast %61 : vector<4x2xf32> to vector<1x4x2xf32>
    tpu.vector_store %arg5[%c0_39, %c0_40, %c0_41], %64 {strides = array<i32>} : memref<1x4x2xf32, #tpu.memory_space<vmem>>, vector<1x4x2xf32>,
    return
  }
  func.func @transform_0(%arg0: i32) -> (i32, i32, i32, i32) {
    %c0_i32 = arith.constant 0 : i32
    %c0_i32_0 = arith.constant 0 : i32
    %c0_i32_1 = arith.constant 0 : i32
    %c0_i32_2 = arith.constant 0 : i32
    return %arg0, %c0_i32, %c0_i32_0, %c0_i32_1 : i32, i32, i32, i32
  }
  func.func @transform_1(%arg0: i32) -> (i32, i32) {
    %c0_i32 = arith.constant 0 : i32
    %c0_i32_0 = arith.constant 0 : i32
    %c0_i32_1 = arith.constant 0 : i32
    return %c0_i32, %c0_i32_0 : i32, i32
  }
  func.func @transform_2(%arg0: i32) -> (i32, i32) {
    %c0_i32 = arith.constant 0 : i32
    %c0_i32_0 = arith.constant 0 : i32
    %c0_i32_1 = arith.constant 0 : i32
    return %c0_i32, %c0_i32_0 : i32, i32
  }
  func.func @transform_3(%arg0: i32) -> (i32, i32, i32) {
    %c0_i32 = arith.constant 0 : i32
    %c0_i32_0 = arith.constant 0 : i32
    %c0_i32_1 = arith.constant 0 : i32
    return %arg0, %c0_i32, %c0_i32_0 : i32, i32, i32
  }
  func.func @transform_4(%arg0: i32) -> (i32, i32, i32) {
    %c0_i32 = arith.constant 0 : i32
    %c0_i32_0 = arith.constant 0 : i32
    %c0_i32_1 = arith.constant 0 : i32
    return %arg0, %c0_i32, %c0_i32_0 : i32, i32, i32
  }
}

</mosaic_0001>

<llo_original>
// kernel: tpu_custom_call.1
$region0: #{tpu_custom_call.1}
  #allocation0 [shape = 'u32[]', space=smem, size = 0x4, offset = 0x4, fixed_abs, tag = 'smem constant byte address 0x4 - core index']
  #allocation1 [shape = 'u32[144,128]{1,0:T(1,128)}', space=vmem, size = 0x12000, scoped, tag = 'internal scratch']
  #allocation2 [shape = 'bf16[18,18,4]{2,1,0:T(8,128)(2,1)}', space=vmem, size = 0x1b000, scoped, tag = 'scratch operand']
  %s0 = inlined_call_operand.vmem [shape: bf16[2,16,16,4], index: 0, kind: input, shape index: {}]
  %s1 = inlined_call_operand.vmem [shape: bf16[8,36], index: 1, kind: input, shape index: {}]
  %s2 = inlined_call_operand.vmem [shape: f32[8,1], index: 2, kind: input, shape index: {}]
  %s3 = inlined_call_operand.hbm [shape: f32[2,8,256], index: 3, kind: output, shape index: {0}]
  %s4 = inlined_call_operand.vmem [shape: f32[2,4,2], index: 4, kind: output, shape index: {1}]
  %5 = xla_tuple %s3, %s4
  %s6 = sld [smem:[#allocation0]]
  $region53: #{tpu_custom_call.1} parent=0
    _
  %s8 = ssub.s32 1, %s6
  %s9 = scalar_select 0, %s8, %s6
  $region1: #{tpu_custom_call.1} parent=0
    #allocation3 [shape = 'u8[16384]{0}', space=vmem, size = 0x4000, scoped, tag = 'output window, operand 0']
    #allocation4 [shape = 's32[2]{0}', space=sflag, size = 0x8, scoped, tag = 'scoped memory for tpu_custom_call.1']
    %10 = vsyncpa [#allocation4], 0
    %s11 = scalar_lea.sflag [#allocation4], 1
    %12 = vsyncpa %s11, 0
    loop: start=0, step=1, limit=4
    $region2: #{tpu_custom_call.1} parent=1 // loop_pre_header
      _
    $region3: #{tpu_custom_call.1} parent=1 // loop_header
      %s14 = sphi 0, %s18
      %p15 = scmp.ge.s32.totalorder %s14, 4
      %s24 = sphi 0, %s26
      %s27 = sphi 0, %s24
      %s28 = sphi 0, %s27
      %s44 = sphi 0, %s28
      %s48 = sphi 0, %s48
      %s50 = sphi 0, %s48
      %s51 = sphi 0, %s50
      %s65 = sphi 0, %s51
      %s69 = sphi 0, %s69
      %s71 = sphi 0, %s69
      %s72 = sphi 0, %s71
      %s86 = sphi 0, %s72
      %s92 = sphi 0, %s94
      %s95 = sphi 0, %s92
      %s96 = sphi 0, %s95
      %s112 = sphi 0, %s96
      %s118 = sphi 0, %s120
      %s121 = sphi 0, %s118
      %s122 = sphi 0, %s121
      %s138 = sphi 0, %s122
    $region4: #{tpu_custom_call.1} parent=1 // loop_header_branch
      %17 = sbr.rel (%p15) target = $region8
    $region5: #{tpu_custom_call.1} parent=1 // loop_body
      %s19 = ssub.s32 %s14, 1
      %s20 = ssub.s32 %s14, 2
      %s21 = sadd.s32 %s14, 1
      %s22 = ssub.s32 %s14, %s21
      %p23 = scmp.eq.s32.totalorder %s22, 0
      %s25 = sadd.s32 %s24, 1
      %s26 = scalar_select %p23, %s24, %s25
      %p29 = pneg %p23
      %p30 = scmp.eq.s32.totalorder %s14, 1
      %p31 = por %p29, %p30
      %p32 = scmp.ne.s32.totalorder %s24, %s27
      %p33 = scmp.eq.s32.totalorder %s14, 0
      %p34 = por %p32, %p33
      %p35 = scmp.ne.s32.totalorder %s24, %s27
      %p36 = scmp.eq.s32.totalorder %s19, 1
      %p37 = por %p35, %p36
      %p38 = scmp.ne.s32.totalorder %s27, %s28
      %p39 = scmp.eq.s32.totalorder %s19, 0
      %p40 = por %p38, %p39
      %p41 = scmp.ne.s32.totalorder %s27, %s28
      %p42 = scmp.eq.s32.totalorder %s20, 1
      %p43 = por %p41, %p42
      %p45 = scmp.ne.s32.totalorder %s28, %s44
      %p46 = scmp.eq.s32.totalorder %s20, 0
      %p47 = por %p45, %p46
      %s49 = sadd.s32 %s48, 1
      %p52 = scmp.eq.s32.totalorder %s14, 1
      %p53 = scmp.ne.s32.totalorder %s48, %s50
      %p54 = scmp.eq.s32.totalorder %s14, 0
      %p55 = por %p53, %p54
      %p56 = scmp.ne.s32.totalorder %s48, %s50
      %p57 = scmp.eq.s32.totalorder %s19, 1
      %p58 = por %p56, %p57
      %p59 = scmp.ne.s32.totalorder %s50, %s51
      %p60 = scmp.eq.s32.totalorder %s19, 0
      %p61 = por %p59, %p60
      %p62 = scmp.ne.s32.totalorder %s50, %s51
      %p63 = scmp.eq.s32.totalorder %s20, 1
      %p64 = por %p62, %p63
      %p66 = scmp.ne.s32.totalorder %s51, %s65
      %p67 = scmp.eq.s32.totalorder %s20, 0
      %p68 = por %p66, %p67
      %s70 = sadd.s32 %s69, 1
      %p73 = scmp.eq.s32.totalorder %s14, 1
      %p74 = scmp.ne.s32.totalorder %s69, %s71
      %p75 = scmp.eq.s32.totalorder %s14, 0
      %p76 = por %p74, %p75
      %p77 = scmp.ne.s32.totalorder %s69, %s71
      %p78 = scmp.eq.s32.totalorder %s19, 1
      %p79 = por %p77, %p78
      %p80 = scmp.ne.s32.totalorder %s71, %s72
      %p81 = scmp.eq.s32.totalorder %s19, 0
      %p82 = por %p80, %p81
      %p83 = scmp.ne.s32.totalorder %s71, %s72
      %p84 = scmp.eq.s32.totalorder %s20, 1
      %p85 = por %p83, %p84
      %p87 = scmp.ne.s32.totalorder %s72, %s86
      %p88 = scmp.eq.s32.totalorder %s20, 0
      %p89 = por %p87, %p88
      %s90 = ssub.s32 %s14, %s21
      %p91 = scmp.eq.s32.totalorder %s90, 0
      %s93 = sadd.s32 %s92, 1
      %s94 = scalar_select %p91, %s92, %s93
      %p97 = pneg %p91
      %p98 = scmp.eq.s32.totalorder %s14, 1
      %p99 = por %p97, %p98
      %p100 = scmp.ne.s32.totalorder %s92, %s95
      %p101 = scmp.eq.s32.totalorder %s14, 0
      %p102 = por %p100, %p101
      %p103 = scmp.ne.s32.totalorder %s92, %s95
      %p104 = scmp.eq.s32.totalorder %s19, 1
      %p105 = por %p103, %p104
      %p106 = scmp.ne.s32.totalorder %s95, %s96
      %p107 = scmp.eq.s32.totalorder %s19, 0
      %p108 = por %p106, %p107
      %p109 = scmp.ne.s32.totalorder %s95, %s96
      %p110 = scmp.eq.s32.totalorder %s20, 1
      %p111 = por %p109, %p110
      %p113 = scmp.ne.s32.totalorder %s96, %s112
      %p114 = scmp.eq.s32.totalorder %s20, 0
      %p115 = por %p113, %p114
      %s116 = ssub.s32 %s14, %s21
      %p117 = scmp.eq.s32.totalorder %s116, 0
      %s119 = sadd.s32 %s118, 1
      %s120 = scalar_select %p117, %s118, %s119
      %p123 = pneg %p117
      %p124 = scmp.eq.s32.totalorder %s14, 1
      %p125 = por %p123, %p124
      %p126 = scmp.ne.s32.totalorder %s118, %s121
      %p127 = scmp.eq.s32.totalorder %s14, 0
      %p128 = por %p126, %p127
      %p129 = scmp.ne.s32.totalorder %s118, %s121
      %p130 = scmp.eq.s32.totalorder %s19, 1
      %p131 = por %p129, %p130
      %p132 = scmp.ne.s32.totalorder %s121, %s122
      %p133 = scmp.eq.s32.totalorder %s19, 0
      %p134 = por %p132, %p133
      %p135 = scmp.ne.s32.totalorder %s121, %s122
      %p136 = scmp.eq.s32.totalorder %s20, 1
      %p137 = por %p135, %p136
      %p139 = scmp.ne.s32.totalorder %s122, %s138
      %p140 = scmp.eq.s32.totalorder %s20, 0
      %p141 = por %p139, %p140
      %p142 = scmp.le.s32.totalorder 1, %s14
      %p143 = scmp.lt.s32.totalorder %s14, 3
      %p144 = pnand %p142, %p143
      %p145 = pneg %p144
      // Predicated region
      $region9: #{tpu_custom_call.1} parent=5 // pred_check
        _
      $region10: #{tpu_custom_call.1} parent=5 // pred_check_branch
        %147 = sbr.rel (%p144) target = $region12
      $region11: #{tpu_custom_call.1} parent=5 // pred_region
        %s148 = ssub.s32 %s14, 1
        // Predicated region
        $region13: #{tpu_custom_call.1} parent=11 // pred_check
          %p149 = pneg %p61
        $region14: #{tpu_custom_call.1} parent=11 // pred_check_branch
          %151 = sbr.rel (%p149) target = $region16
        $region15: #{tpu_custom_call.1} parent=11 // pred_region
          _
        $region16: #{tpu_custom_call.1} parent=11 // pred_fallthru
          _
        // Predicated region
        $region17: #{tpu_custom_call.1} parent=11 // pred_check
          %p152 = pneg %p82
        $region18: #{tpu_custom_call.1} parent=11 // pred_check_branch
          %154 = sbr.rel (%p152) target = $region20
        $region19: #{tpu_custom_call.1} parent=11 // pred_region
          _
        $region20: #{tpu_custom_call.1} parent=11 // pred_fallthru
          _
      $region12: #{tpu_custom_call.1} parent=5 // pred_fallthru
        _
      %p155 = scmp.lt.s32.totalorder %s14, 2
      // Predicated region
      $region21: #{tpu_custom_call.1} parent=5 // pred_check
        %p156 = pneg %p155
      $region22: #{tpu_custom_call.1} parent=5 // pred_check_branch
        %158 = sbr.rel (%p156) target = $region24
      $region23: #{tpu_custom_call.1} parent=5 // pred_region
        // Predicated region
        $region25: #{tpu_custom_call.1} parent=23 // pred_check
          %p159 = pneg %p34
        $region26: #{tpu_custom_call.1} parent=23 // pred_check_branch
          %161 = sbr.rel (%p159) target = $region28
        $region27: #{tpu_custom_call.1} parent=23 // pred_region
          %p162 = scmp.lt.s32.totalorder %s14, 1
          %s163 = scalar_select %p162, %s14, 1
          %s164 = smul.addr %s163, 32
          %s165 = smul.addr %s164, 4
          %s166 = scalar_lea.vmem %s0, %s165
        $region28: #{tpu_custom_call.1} parent=23 // pred_fallthru
          _
      $region24: #{tpu_custom_call.1} parent=5 // pred_fallthru
        _
      %p167 = scmp.le.s32.totalorder 1, %s14
      %p168 = scmp.lt.s32.totalorder %s14, 3
      %p169 = pnand %p167, %p168
      %p170 = pneg %p169
      // Predicated region
      $region29: #{tpu_custom_call.1} parent=5 // pred_check
        _
      $region30: #{tpu_custom_call.1} parent=5 // pred_check_branch
        %172 = sbr.rel (%p169) target = $region32
      $region31: #{tpu_custom_call.1} parent=5 // pred_region
        %s173 = ssub.s32 %s14, 1
        %p174 = scmp.lt.s32.totalorder %s19, 1
        %s175 = scalar_select %p174, %s19, 1
        %s176 = smul.addr %s175, 32
        %s177 = smul.addr %s176, 4
        %s178 = scalar_lea.vmem %s0, %s177
        %p179 = pneg %p40
        %p180 = pneg %p37
        %p181 = pneg %p61
        %p182 = pneg %p58
        %p183 = pneg %p82
        %p184 = pneg %p79
        %p185 = pneg %p108
        %p186 = pneg %p105
        %s187 = sand.u32 %s95, 1
        %s188 = scalar_lea.sflag [#allocation4], %s187
        %s189 = sand.u32 %s95, 1
        %s190 = smul.addr %s189, 16
        %s191 = scalar_lea.vmem [#allocation3], %s190
        %p192 = pneg %p134
        %p193 = pneg %p131
        %p194 = scmp.lt.s32.totalorder %s19, 1
        %s195 = scalar_select %p194, %s19, 1
        %s196 = smul.addr %s195, 4
        %s197 = scalar_lea.vmem %s4, %s196
        %p198 = scmp.lt.s32.totalorder %s19, 1
        %s199 = scalar_select %p198, %s19, 1
        %s200 = smul.addr %s199, 32
        %s201 = smul.addr %s200, 4
        %s202 = scalar_lea.vmem %s0, %s201
        %p203 = scmp.lt.s32.totalorder %s19, 1
        %s204 = scalar_select %p203, %s19, 1
        %s205 = smul.addr %s204, 4
        %s206 = scalar_lea.vmem %s4, %s205
        %vm208 = vcmask 27648
        %209 = vst.msk [vmem:[#allocation2] sm:$0xf] %vm208, 0
        %210 = vst.msk [vmem:[#allocation2 + $0x4] sm:$0xf] %vm208, 0
        %vm211 = vcmask 24576
        %212 = vst.msk [vmem:[#allocation2 + $0x8] sm:$0x1] %vm211, 0
        %s213 = scalar_lea.vmem [#allocation2], 204
        %214 = vst.msk [vmem:[%s213] sm:$0xf] %vm208, 0
        %215 = vst.msk [vmem:[%s213 + $0x4] sm:$0xf] %vm208, 0
        %216 = vst.msk [vmem:[%s213 + $0x8] sm:$0x1] %vm211, 0
        %s217 = scalar_lea.vmem [#allocation2], 12
        %vm218 = vcmask 24576
        %vm219 = vsmask.f32 256
        %vm220 = vmand %vm218, %vm219
        %v221 = vld [vmem:[%s217] sm:$0x1]
        %v222 = vsel %vm220, 0, %v221
        %223 = vst [vmem:[%s217] sm:$0x1] %v222
        %v224 = vld [vmem:[%s217 + $0xc] sm:$0x1]
        %v225 = vsel %vm220, 0, %v224
        %226 = vst [vmem:[%s217 + $0xc] sm:$0x1] %v225
        %v227 = vld [vmem:[%s217 + $0x18] sm:$0x1]
        %v228 = vsel %vm220, 0, %v227
        %229 = vst [vmem:[%s217 + $0x18] sm:$0x1] %v228
        %v230 = vld [vmem:[%s217 + $0x24] sm:$0x1]
        %v231 = vsel %vm220, 0, %v230
        %232 = vst [vmem:[%s217 + $0x24] sm:$0x1] %v231
        %v233 = vld [vmem:[%s217 + $0x30] sm:$0x1]
        %v234 = vsel %vm220, 0, %v233
        %235 = vst [vmem:[%s217 + $0x30] sm:$0x1] %v234
        %v236 = vld [vmem:[%s217 + $0x3c] sm:$0x1]
        %v237 = vsel %vm220, 0, %v236
        %238 = vst [vmem:[%s217 + $0x3c] sm:$0x1] %v237
        %v239 = vld [vmem:[%s217 + $0x48] sm:$0x1]
        %v240 = vsel %vm220, 0, %v239
        %241 = vst [vmem:[%s217 + $0x48] sm:$0x1] %v240
        %v242 = vld [vmem:[%s217 + $0x54] sm:$0x1]
        %v243 = vsel %vm220, 0, %v242
        %244 = vst [vmem:[%s217 + $0x54] sm:$0x1] %v243
        %v245 = vld [vmem:[%s217 + $0x60] sm:$0x1]
        %v246 = vsel %vm220, 0, %v245
        %247 = vst [vmem:[%s217 + $0x60] sm:$0x1] %v246
        %v248 = vld [vmem:[%s217 + $0x6c] sm:$0x1]
        %v249 = vsel %vm220, 0, %v248
        %250 = vst [vmem:[%s217 + $0x6c] sm:$0x1] %v249
        %v251 = vld [vmem:[%s217 + $0x78] sm:$0x1]
        %v252 = vsel %vm220, 0, %v251
        %253 = vst [vmem:[%s217 + $0x78] sm:$0x1] %v252
        %v254 = vld [vmem:[%s217 + $0x84] sm:$0x1]
        %v255 = vsel %vm220, 0, %v254
        %256 = vst [vmem:[%s217 + $0x84] sm:$0x1] %v255
        %v257 = vld [vmem:[%s217 + $0x90] sm:$0x1]
        %v258 = vsel %vm220, 0, %v257
        %259 = vst [vmem:[%s217 + $0x90] sm:$0x1] %v258
        %v260 = vld [vmem:[%s217 + $0x9c] sm:$0x1]
        %v261 = vsel %vm220, 0, %v260
        %262 = vst [vmem:[%s217 + $0x9c] sm:$0x1] %v261
        %v263 = vld [vmem:[%s217 + $0xa8] sm:$0x1]
        %v264 = vsel %vm220, 0, %v263
        %265 = vst [vmem:[%s217 + $0xa8] sm:$0x1] %v264
        %v266 = vld [vmem:[%s217 + $0xb4] sm:$0x1]
        %v267 = vsel %vm220, 0, %v266
        %268 = vst [vmem:[%s217 + $0xb4] sm:$0x1] %v267
        %vm269 = vsmask.f32 7938
        %vm270 = vmand %vm218, %vm269
        %v271 = vld [vmem:[%s217 + $0x8] sm:$0x1]
        %v272 = vsel %vm270, 0, %v271
        %273 = vst [vmem:[%s217 + $0x8] sm:$0x1] %v272
        %v274 = vld [vmem:[%s217 + $0x14] sm:$0x1]
        %v275 = vsel %vm270, 0, %v274
        %276 = vst [vmem:[%s217 + $0x14] sm:$0x1] %v275
        %v277 = vld [vmem:[%s217 + $0x20] sm:$0x1]
        %v278 = vsel %vm270, 0, %v277
        %279 = vst [vmem:[%s217 + $0x20] sm:$0x1] %v278
        %v280 = vld [vmem:[%s217 + $0x2c] sm:$0x1]
        %v281 = vsel %vm270, 0, %v280
        %282 = vst [vmem:[%s217 + $0x2c] sm:$0x1] %v281
        %v283 = vld [vmem:[%s217 + $0x38] sm:$0x1]
        %v284 = vsel %vm270, 0, %v283
        %285 = vst [vmem:[%s217 + $0x38] sm:$0x1] %v284
        %v286 = vld [vmem:[%s217 + $0x44] sm:$0x1]
        %v287 = vsel %vm270, 0, %v286
        %288 = vst [vmem:[%s217 + $0x44] sm:$0x1] %v287
        %v289 = vld [vmem:[%s217 + $0x50] sm:$0x1]
        %v290 = vsel %vm270, 0, %v289
        %291 = vst [vmem:[%s217 + $0x50] sm:$0x1] %v290
        %v292 = vld [vmem:[%s217 + $0x5c] sm:$0x1]
        %v293 = vsel %vm270, 0, %v292
        %294 = vst [vmem:[%s217 + $0x5c] sm:$0x1] %v293
        %v295 = vld [vmem:[%s217 + $0x68] sm:$0x1]
        %v296 = vsel %vm270, 0, %v295
        %297 = vst [vmem:[%s217 + $0x68] sm:$0x1] %v296
        %v298 = vld [vmem:[%s217 + $0x74] sm:$0x1]
        %v299 = vsel %vm270, 0, %v298
        %300 = vst [vmem:[%s217 + $0x74] sm:$0x1] %v299
        %v301 = vld [vmem:[%s217 + $0x80] sm:$0x1]
        %v302 = vsel %vm270, 0, %v301
        %303 = vst [vmem:[%s217 + $0x80] sm:$0x1] %v302
        %v304 = vld [vmem:[%s217 + $0x8c] sm:$0x1]
        %v305 = vsel %vm270, 0, %v304
        %306 = vst [vmem:[%s217 + $0x8c] sm:$0x1] %v305
        %v307 = vld [vmem:[%s217 + $0x98] sm:$0x1]
        %v308 = vsel %vm270, 0, %v307
        %309 = vst [vmem:[%s217 + $0x98] sm:$0x1] %v308
        %v310 = vld [vmem:[%s217 + $0xa4] sm:$0x1]
        %v311 = vsel %vm270, 0, %v310
        %312 = vst [vmem:[%s217 + $0xa4] sm:$0x1] %v311
        %v313 = vld [vmem:[%s217 + $0xb0] sm:$0x1]
        %v314 = vsel %vm270, 0, %v313
        %315 = vst [vmem:[%s217 + $0xb0] sm:$0x1] %v314
        %v316 = vld [vmem:[%s217 + $0xbc] sm:$0x1]
        %v317 = vsel %vm270, 0, %v316
        %318 = vst [vmem:[%s217 + $0xbc] sm:$0x1] %v317
        %v319 = vld [vmem:[%s202] sm:$0xf]
        %v320 = vld [vmem:[%s202 + $0x4] sm:$0xf]
        %v321 = vld [vmem:[%s202 + $0x8] sm:$0xf]
        %v322 = vld [vmem:[%s202 + $0xc] sm:$0xf]
        %v323 = vld [vmem:[%s202 + $0x10] sm:$0xf]
        %v324 = vld [vmem:[%s202 + $0x14] sm:$0xf]
        %v325 = vld [vmem:[%s202 + $0x18] sm:$0xf]
        %v326 = vld [vmem:[%s202 + $0x1c] sm:$0xf]
        %v327 = vld [vmem:[%s202 + $0x20] sm:$0xf]
        %v328 = vld [vmem:[%s202 + $0x24] sm:$0xf]
        %v329 = vld [vmem:[%s202 + $0x28] sm:$0xf]
        %v330 = vld [vmem:[%s202 + $0x2c] sm:$0xf]
        %v331 = vld [vmem:[%s202 + $0x30] sm:$0xf]
        %v332 = vld [vmem:[%s202 + $0x34] sm:$0xf]
        %v333 = vld [vmem:[%s202 + $0x38] sm:$0xf]
        %v334 = vld [vmem:[%s202 + $0x3c] sm:$0xf]
        %v335 = vld [vmem:[%s202 + $0x40] sm:$0xf]
        %v336 = vld [vmem:[%s202 + $0x44] sm:$0xf]
        %v337 = vld [vmem:[%s202 + $0x48] sm:$0xf]
        %v338 = vld [vmem:[%s202 + $0x4c] sm:$0xf]
        %v339 = vld [vmem:[%s202 + $0x50] sm:$0xf]
        %v340 = vld [vmem:[%s202 + $0x54] sm:$0xf]
        %v341 = vld [vmem:[%s202 + $0x58] sm:$0xf]
        %v342 = vld [vmem:[%s202 + $0x5c] sm:$0xf]
        %v343 = vld [vmem:[%s202 + $0x60] sm:$0xf]
        %v344 = vld [vmem:[%s202 + $0x64] sm:$0xf]
        %v345 = vld [vmem:[%s202 + $0x68] sm:$0xf]
        %v346 = vld [vmem:[%s202 + $0x6c] sm:$0xf]
        %v347 = vld [vmem:[%s202 + $0x70] sm:$0xf]
        %v348 = vld [vmem:[%s202 + $0x74] sm:$0xf]
        %v349 = vld [vmem:[%s202 + $0x78] sm:$0xf]
        %v350 = vld [vmem:[%s202 + $0x7c] sm:$0xf]
        %vm351 = vsmask.f32 4368
        %vm352 = vmor %vm219, %vm351
        %v354 = vshrl.u32 %v319, 16
        %v356 = vrot.slane %v354, 7
        %v357 = vshll.u32 %v319, 16
        %v359 = vor.u32 %v356, %v357
        %v360 = vrot.slane %v356, 4
        %v362 = vshrl.u32 %v320, 16
        %v364 = vrot.slane %v362, 7
        %v365 = vshll.u32 %v320, 16
        %v367 = vor.u32 %v364, %v365
        %v368 = vsel %vm352, %v360, %v367
        %v369 = vrot.slane %v364, 4
        %v371 = vshrl.u32 %v321, 16
        %v373 = vrot.slane %v371, 7
        %v374 = vshll.u32 %v321, 16
        %v376 = vor.u32 %v373, %v374
        %v377 = vrot.slane %v373, 4
        %v379 = vshrl.u32 %v322, 16
        %v381 = vrot.slane %v379, 7
        %v382 = vshll.u32 %v322, 16
        %v384 = vor.u32 %v381, %v382
        %v385 = vsel %vm352, %v377, %v384
        %v386 = vrot.slane %v381, 4
        %v388 = vshrl.u32 %v323, 16
        %v390 = vrot.slane %v388, 7
        %v391 = vshll.u32 %v323, 16
        %v393 = vor.u32 %v390, %v391
        %v394 = vrot.slane %v390, 4
        %v396 = vshrl.u32 %v324, 16
        %v398 = vrot.slane %v396, 7
        %v399 = vshll.u32 %v324, 16
        %v401 = vor.u32 %v398, %v399
        %v402 = vsel %vm352, %v394, %v401
        %v403 = vrot.slane %v398, 4
        %v405 = vshrl.u32 %v325, 16
        %v407 = vrot.slane %v405, 7
        %v408 = vshll.u32 %v325, 16
        %v410 = vor.u32 %v407, %v408
        %v411 = vrot.slane %v407, 4
        %v413 = vshrl.u32 %v326, 16
        %v415 = vrot.slane %v413, 7
        %v416 = vshll.u32 %v326, 16
        %v418 = vor.u32 %v415, %v416
        %v419 = vsel %vm352, %v411, %v418
        %v420 = vrot.slane %v415, 4
        %v422 = vshrl.u32 %v327, 16
        %v424 = vrot.slane %v422, 7
        %v425 = vshll.u32 %v327, 16
        %v427 = vor.u32 %v424, %v425
        %v428 = vrot.slane %v424, 4
        %v430 = vshrl.u32 %v328, 16
        %v432 = vrot.slane %v430, 7
        %v433 = vshll.u32 %v328, 16
        %v435 = vor.u32 %v432, %v433
        %v436 = vsel %vm352, %v428, %v435
        %v437 = vrot.slane %v432, 4
        %v439 = vshrl.u32 %v329, 16
        %v441 = vrot.slane %v439, 7
        %v442 = vshll.u32 %v329, 16
        %v444 = vor.u32 %v441, %v442
        %v445 = vrot.slane %v441, 4
        %v447 = vshrl.u32 %v330, 16
        %v449 = vrot.slane %v447, 7
        %v450 = vshll.u32 %v330, 16
        %v452 = vor.u32 %v449, %v450
        %v453 = vsel %vm352, %v445, %v452
        %v454 = vrot.slane %v449, 4
        %v456 = vshrl.u32 %v331, 16
        %v458 = vrot.slane %v456, 7
        %v459 = vshll.u32 %v331, 16
        %v461 = vor.u32 %v458, %v459
        %v462 = vrot.slane %v458, 4
        %v464 = vshrl.u32 %v332, 16
        %v466 = vrot.slane %v464, 7
        %v467 = vshll.u32 %v332, 16
        %v469 = vor.u32 %v466, %v467
        %v470 = vsel %vm352, %v462, %v469
        %v471 = vrot.slane %v466, 4
        %v473 = vshrl.u32 %v333, 16
        %v475 = vrot.slane %v473, 7
        %v476 = vshll.u32 %v333, 16
        %v478 = vor.u32 %v475, %v476
        %v479 = vrot.slane %v475, 4
        %v481 = vshrl.u32 %v334, 16
        %v483 = vrot.slane %v481, 7
        %v484 = vshll.u32 %v334, 16
        %v486 = vor.u32 %v483, %v484
        %v487 = vsel %vm352, %v479, %v486
        %v488 = vrot.slane %v483, 4
        %v490 = vshrl.u32 %v335, 16
        %v492 = vrot.slane %v490, 7
        %v493 = vshll.u32 %v335, 16
        %v495 = vor.u32 %v492, %v493
        %v496 = vrot.slane %v492, 4
        %v498 = vshrl.u32 %v336, 16
        %v500 = vrot.slane %v498, 7
        %v501 = vshll.u32 %v336, 16
        %v503 = vor.u32 %v500, %v501
        %v504 = vsel %vm352, %v496, %v503
        %v505 = vrot.slane %v500, 4
        %v507 = vshrl.u32 %v337, 16
        %v509 = vrot.slane %v507, 7
        %v510 = vshll.u32 %v337, 16
        %v512 = vor.u32 %v509, %v510
        %v513 = vrot.slane %v509, 4
        %v515 = vshrl.u32 %v338, 16
        %v517 = vrot.slane %v515, 7
        %v518 = vshll.u32 %v338, 16
        %v520 = vor.u32 %v517, %v518
        %v521 = vsel %vm352, %v513, %v520
        %v522 = vrot.slane %v517, 4
        %v524 = vshrl.u32 %v339, 16
        %v526 = vrot.slane %v524, 7
        %v527 = vshll.u32 %v339, 16
        %v529 = vor.u32 %v526, %v527
        %v530 = vrot.slane %v526, 4
        %v532 = vshrl.u32 %v340, 16
        %v534 = vrot.slane %v532, 7
        %v535 = vshll.u32 %v340, 16
        %v537 = vor.u32 %v534, %v535
        %v538 = vsel %vm352, %v530, %v537
        %v539 = vrot.slane %v534, 4
        %v541 = vshrl.u32 %v341, 16
        %v543 = vrot.slane %v541, 7
        %v544 = vshll.u32 %v341, 16
        %v546 = vor.u32 %v543, %v544
        %v547 = vrot.slane %v543, 4
        %v549 = vshrl.u32 %v342, 16
        %v551 = vrot.slane %v549, 7
        %v552 = vshll.u32 %v342, 16
        %v554 = vor.u32 %v551, %v552
        %v555 = vsel %vm352, %v547, %v554
        %v556 = vrot.slane %v551, 4
        %v558 = vshrl.u32 %v343, 16
        %v560 = vrot.slane %v558, 7
        %v561 = vshll.u32 %v343, 16
        %v563 = vor.u32 %v560, %v561
        %v564 = vrot.slane %v560, 4
        %v566 = vshrl.u32 %v344, 16
        %v568 = vrot.slane %v566, 7
        %v569 = vshll.u32 %v344, 16
        %v571 = vor.u32 %v568, %v569
        %v572 = vsel %vm352, %v564, %v571
        %v573 = vrot.slane %v568, 4
        %v575 = vshrl.u32 %v345, 16
        %v577 = vrot.slane %v575, 7
        %v578 = vshll.u32 %v345, 16
        %v580 = vor.u32 %v577, %v578
        %v581 = vrot.slane %v577, 4
        %v583 = vshrl.u32 %v346, 16
        %v585 = vrot.slane %v583, 7
        %v586 = vshll.u32 %v346, 16
        %v588 = vor.u32 %v585, %v586
        %v589 = vsel %vm352, %v581, %v588
        %v590 = vrot.slane %v585, 4
        %v592 = vshrl.u32 %v347, 16
        %v594 = vrot.slane %v592, 7
        %v595 = vshll.u32 %v347, 16
        %v597 = vor.u32 %v594, %v595
        %v598 = vrot.slane %v594, 4
        %v600 = vshrl.u32 %v348, 16
        %v602 = vrot.slane %v600, 7
        %v603 = vshll.u32 %v348, 16
        %v605 = vor.u32 %v602, %v603
        %v606 = vsel %vm352, %v598, %v605
        %v607 = vrot.slane %v602, 4
        %v609 = vshrl.u32 %v349, 16
        %v611 = vrot.slane %v609, 7
        %v612 = vshll.u32 %v349, 16
        %v614 = vor.u32 %v611, %v612
        %v615 = vrot.slane %v611, 4
        %v617 = vshrl.u32 %v350, 16
        %v619 = vrot.slane %v617, 7
        %v620 = vshll.u32 %v350, 16
        %v622 = vor.u32 %v619, %v620
        %v623 = vsel %vm352, %v615, %v622
        %v624 = vrot.slane %v619, 4
        %vm673 = vcmask 27648
        %vm674 = vmand %vm673, %vm269
        %v675 = vld [vmem:[%s217] sm:$0xf]
        %v676 = vsel %vm674, %v359, %v675
        %677 = vst [vmem:[%s217] sm:$0xf] %v676
        %678 = vst.msk [vmem:[%s217 + $0x4] sm:$0xf] %vm208, %v368
        %v679 = vld [vmem:[%s217 + $0x8] sm:$0x1]
        %v680 = vsel %vm220, %v369, %v679
        %681 = vst [vmem:[%s217 + $0x8] sm:$0x1] %v680
        %v682 = vld [vmem:[%s217 + $0xc] sm:$0xf]
        %v683 = vsel %vm674, %v376, %v682
        %684 = vst [vmem:[%s217 + $0xc] sm:$0xf] %v683
        %685 = vst.msk [vmem:[%s217 + $0x10] sm:$0xf] %vm208, %v385
        %v686 = vld [vmem:[%s217 + $0x14] sm:$0x1]
        %v687 = vsel %vm220, %v386, %v686
        %688 = vst [vmem:[%s217 + $0x14] sm:$0x1] %v687
        %v689 = vld [vmem:[%s217 + $0x18] sm:$0xf]
        %v690 = vsel %vm674, %v393, %v689
        %691 = vst [vmem:[%s217 + $0x18] sm:$0xf] %v690
        %692 = vst.msk [vmem:[%s217 + $0x1c] sm:$0xf] %vm208, %v402
        %v693 = vld [vmem:[%s217 + $0x20] sm:$0x1]
        %v694 = vsel %vm220, %v403, %v693
        %695 = vst [vmem:[%s217 + $0x20] sm:$0x1] %v694
        %v696 = vld [vmem:[%s217 + $0x24] sm:$0xf]
        %v697 = vsel %vm674, %v410, %v696
        %698 = vst [vmem:[%s217 + $0x24] sm:$0xf] %v697
        %699 = vst.msk [vmem:[%s217 + $0x28] sm:$0xf] %vm208, %v419
        %v700 = vld [vmem:[%s217 + $0x2c] sm:$0x1]
        %v701 = vsel %vm220, %v420, %v700
        %702 = vst [vmem:[%s217 + $0x2c] sm:$0x1] %v701
        %v703 = vld [vmem:[%s217 + $0x30] sm:$0xf]
        %v704 = vsel %vm674, %v427, %v703
        %705 = vst [vmem:[%s217 + $0x30] sm:$0xf] %v704
        %706 = vst.msk [vmem:[%s217 + $0x34] sm:$0xf] %vm208, %v436
        %v707 = vld [vmem:[%s217 + $0x38] sm:$0x1]
        %v708 = vsel %vm220, %v437, %v707
        %709 = vst [vmem:[%s217 + $0x38] sm:$0x1] %v708
        %v710 = vld [vmem:[%s217 + $0x3c] sm:$0xf]
        %v711 = vsel %vm674, %v444, %v710
        %712 = vst [vmem:[%s217 + $0x3c] sm:$0xf] %v711
        %713 = vst.msk [vmem:[%s217 + $0x40] sm:$0xf] %vm208, %v453
        %v714 = vld [vmem:[%s217 + $0x44] sm:$0x1]
        %v715 = vsel %vm220, %v454, %v714
        %716 = vst [vmem:[%s217 + $0x44] sm:$0x1] %v715
        %v717 = vld [vmem:[%s217 + $0x48] sm:$0xf]
        %v718 = vsel %vm674, %v461, %v717
        %719 = vst [vmem:[%s217 + $0x48] sm:$0xf] %v718
        %720 = vst.msk [vmem:[%s217 + $0x4c] sm:$0xf] %vm208, %v470
        %v721 = vld [vmem:[%s217 + $0x50] sm:$0x1]
        %v722 = vsel %vm220, %v471, %v721
        %723 = vst [vmem:[%s217 + $0x50] sm:$0x1] %v722
        %v724 = vld [vmem:[%s217 + $0x54] sm:$0xf]
        %v725 = vsel %vm674, %v478, %v724
        %726 = vst [vmem:[%s217 + $0x54] sm:$0xf] %v725
        %727 = vst.msk [vmem:[%s217 + $0x58] sm:$0xf] %vm208, %v487
        %v728 = vld [vmem:[%s217 + $0x5c] sm:$0x1]
        %v729 = vsel %vm220, %v488, %v728
        %730 = vst [vmem:[%s217 + $0x5c] sm:$0x1] %v729
        %v731 = vld [vmem:[%s217 + $0x60] sm:$0xf]
        %v732 = vsel %vm674, %v495, %v731
        %733 = vst [vmem:[%s217 + $0x60] sm:$0xf] %v732
        %734 = vst.msk [vmem:[%s217 + $0x64] sm:$0xf] %vm208, %v504
        %v735 = vld [vmem:[%s217 + $0x68] sm:$0x1]
        %v736 = vsel %vm220, %v505, %v735
        %737 = vst [vmem:[%s217 + $0x68] sm:$0x1] %v736
        %v738 = vld [vmem:[%s217 + $0x6c] sm:$0xf]
        %v739 = vsel %vm674, %v512, %v738
        %740 = vst [vmem:[%s217 + $0x6c] sm:$0xf] %v739
        %741 = vst.msk [vmem:[%s217 + $0x70] sm:$0xf] %vm208, %v521
        %v742 = vld [vmem:[%s217 + $0x74] sm:$0x1]
        %v743 = vsel %vm220, %v522, %v742
        %744 = vst [vmem:[%s217 + $0x74] sm:$0x1] %v743
        %v745 = vld [vmem:[%s217 + $0x78] sm:$0xf]
        %v746 = vsel %vm674, %v529, %v745
        %747 = vst [vmem:[%s217 + $0x78] sm:$0xf] %v746
        %748 = vst.msk [vmem:[%s217 + $0x7c] sm:$0xf] %vm208, %v538
        %v749 = vld [vmem:[%s217 + $0x80] sm:$0x1]
        %v750 = vsel %vm220, %v539, %v749
        %751 = vst [vmem:[%s217 + $0x80] sm:$0x1] %v750
        %v752 = vld [vmem:[%s217 + $0x84] sm:$0xf]
        %v753 = vsel %vm674, %v546, %v752
        %754 = vst [vmem:[%s217 + $0x84] sm:$0xf] %v753
        %755 = vst.msk [vmem:[%s217 + $0x88] sm:$0xf] %vm208, %v555
        %v756 = vld [vmem:[%s217 + $0x8c] sm:$0x1]
        %v757 = vsel %vm220, %v556, %v756
        %758 = vst [vmem:[%s217 + $0x8c] sm:$0x1] %v757
        %v759 = vld [vmem:[%s217 + $0x90] sm:$0xf]
        %v760 = vsel %vm674, %v563, %v759
        %761 = vst [vmem:[%s217 + $0x90] sm:$0xf] %v760
        %762 = vst.msk [vmem:[%s217 + $0x94] sm:$0xf] %vm208, %v572
        %v763 = vld [vmem:[%s217 + $0x98] sm:$0x1]
        %v764 = vsel %vm220, %v573, %v763
        %765 = vst [vmem:[%s217 + $0x98] sm:$0x1] %v764
        %v766 = vld [vmem:[%s217 + $0x9c] sm:$0xf]
        %v767 = vsel %vm674, %v580, %v766
        %768 = vst [vmem:[%s217 + $0x9c] sm:$0xf] %v767
        %769 = vst.msk [vmem:[%s217 + $0xa0] sm:$0xf] %vm208, %v589
        %v770 = vld [vmem:[%s217 + $0xa4] sm:$0x1]
        %v771 = vsel %vm220, %v590, %v770
        %772 = vst [vmem:[%s217 + $0xa4] sm:$0x1] %v771
        %v773 = vld [vmem:[%s217 + $0xa8] sm:$0xf]
        %v774 = vsel %vm674, %v597, %v773
        %775 = vst [vmem:[%s217 + $0xa8] sm:$0xf] %v774
        %776 = vst.msk [vmem:[%s217 + $0xac] sm:$0xf] %vm208, %v606
        %v777 = vld [vmem:[%s217 + $0xb0] sm:$0x1]
        %v778 = vsel %vm220, %v607, %v777
        %779 = vst [vmem:[%s217 + $0xb0] sm:$0x1] %v778
        %v780 = vld [vmem:[%s217 + $0xb4] sm:$0xf]
        %v781 = vsel %vm674, %v614, %v780
        %782 = vst [vmem:[%s217 + $0xb4] sm:$0xf] %v781
        %783 = vst.msk [vmem:[%s217 + $0xb8] sm:$0xf] %vm208, %v623
        %v784 = vld [vmem:[%s217 + $0xbc] sm:$0x1]
        %v785 = vsel %vm220, %v624, %v784
        %786 = vst [vmem:[%s217 + $0xbc] sm:$0x1] %v785
        %v787 = vld [vmem:[#allocation2] sm:$0xf]
        %v788 = vld [vmem:[#allocation2 + $0x4] sm:$0xf]
        %v789 = vld [vmem:[#allocation2 + $0x8] sm:$0x1]
        %v790 = vld [vmem:[#allocation2 + $0xc] sm:$0xf]
        %v791 = vld [vmem:[#allocation2 + $0x10] sm:$0xf]
        %v792 = vld [vmem:[#allocation2 + $0x14] sm:$0x1]
        %v793 = vld [vmem:[#allocation2 + $0x18] sm:$0xf]
        %v794 = vld [vmem:[#allocation2 + $0x1c] sm:$0xf]
        %v795 = vld [vmem:[#allocation2 + $0x20] sm:$0x1]
        %v796 = vld [vmem:[#allocation2 + $0x24] sm:$0xf]
        %v797 = vld [vmem:[#allocation2 + $0x28] sm:$0xf]
        %v798 = vld [vmem:[#allocation2 + $0x2c] sm:$0x1]
        %v799 = vld [vmem:[#allocation2 + $0x30] sm:$0xf]
        %v800 = vld [vmem:[#allocation2 + $0x34] sm:$0xf]
        %v801 = vld [vmem:[#allocation2 + $0x38] sm:$0x1]
        %v802 = vld [vmem:[#allocation2 + $0x3c] sm:$0xf]
        %v803 = vld [vmem:[#allocation2 + $0x40] sm:$0xf]
        %v804 = vld [vmem:[#allocation2 + $0x44] sm:$0x1]
        %v805 = vld [vmem:[#allocation2 + $0x48] sm:$0xf]
        %v806 = vld [vmem:[#allocation2 + $0x4c] sm:$0xf]
        %v807 = vld [vmem:[#allocation2 + $0x50] sm:$0x1]
        %v808 = vld [vmem:[#allocation2 + $0x54] sm:$0xf]
        %v809 = vld [vmem:[#allocation2 + $0x58] sm:$0xf]
        %v810 = vld [vmem:[#allocation2 + $0x5c] sm:$0x1]
        %v811 = vld [vmem:[#allocation2 + $0x60] sm:$0xf]
        %v812 = vld [vmem:[#allocation2 + $0x64] sm:$0xf]
        %v813 = vld [vmem:[#allocation2 + $0x68] sm:$0x1]
        %v814 = vld [vmem:[#allocation2 + $0x6c] sm:$0xf]
        %v815 = vld [vmem:[#allocation2 + $0x70] sm:$0xf]
        %v816 = vld [vmem:[#allocation2 + $0x74] sm:$0x1]
        %v817 = vld [vmem:[#allocation2 + $0x78] sm:$0xf]
        %v818 = vld [vmem:[#allocation2 + $0x7c] sm:$0xf]
        %v819 = vld [vmem:[#allocation2 + $0x80] sm:$0x1]
        %v820 = vld [vmem:[#allocation2 + $0x84] sm:$0xf]
        %v821 = vld [vmem:[#allocation2 + $0x88] sm:$0xf]
        %v822 = vld [vmem:[#allocation2 + $0x8c] sm:$0x1]
        %v823 = vld [vmem:[#allocation2 + $0x90] sm:$0xf]
        %v824 = vld [vmem:[#allocation2 + $0x94] sm:$0xf]
        %v825 = vld [vmem:[#allocation2 + $0x98] sm:$0x1]
        %v826 = vld [vmem:[#allocation2 + $0x9c] sm:$0xf]
        %v827 = vld [vmem:[#allocation2 + $0xa0] sm:$0xf]
        %v828 = vld [vmem:[#allocation2 + $0xa4] sm:$0x1]
        %v829 = vld [vmem:[#allocation2 + $0xa8] sm:$0xf]
        %v830 = vld [vmem:[#allocation2 + $0xac] sm:$0xf]
        %v831 = vld [vmem:[#allocation2 + $0xb0] sm:$0x1]
        %v832 = vld [vmem:[#allocation2 + $0xb4] sm:$0xf]
        %v833 = vld [vmem:[#allocation2 + $0xb8] sm:$0xf]
        %v834 = vld [vmem:[#allocation2 + $0xbc] sm:$0x1]
        %v835 = vld [vmem:[#allocation2 + $0xc0] sm:$0xf]
        %v836 = vld [vmem:[#allocation2 + $0xc4] sm:$0xf]
        %v837 = vld [vmem:[#allocation2 + $0xc8] sm:$0x1]
        %v838 = vld [vmem:[#allocation2 + $0xcc] sm:$0xf]
        %v839 = vld [vmem:[#allocation2 + $0xd0] sm:$0xf]
        %v840 = vld [vmem:[#allocation2 + $0xd4] sm:$0x1]
        %v873 = vunpack.c.l.b16 %v787
        %v874 = vunpack.c.l.b16 %v788
        %v875 = vunpack.c.l.b16 %v790
        %v876 = vunpack.c.l.b16 %v791
        %v877 = vunpack.c.l.b16 %v793
        %v878 = vunpack.c.l.b16 %v794
        %v879 = vunpack.c.l.b16 %v796
        %v880 = vunpack.c.l.b16 %v797
        %v881 = vunpack.c.l.b16 %v799
        %v882 = vunpack.c.l.b16 %v800
        %v883 = vunpack.c.l.b16 %v802
        %v884 = vunpack.c.l.b16 %v803
        %v885 = vunpack.c.l.b16 %v805
        %v886 = vunpack.c.l.b16 %v806
        %v887 = vunpack.c.l.b16 %v808
        %v888 = vunpack.c.l.b16 %v809
        %v889 = vunpack.c.l.b16 %v811
        %v890 = vunpack.c.l.b16 %v812
        %v891 = vunpack.c.l.b16 %v814
        %v892 = vunpack.c.l.b16 %v815
        %v893 = vunpack.c.l.b16 %v817
        %v894 = vunpack.c.l.b16 %v818
        %v895 = vunpack.c.l.b16 %v820
        %v896 = vunpack.c.l.b16 %v821
        %v897 = vunpack.c.l.b16 %v823
        %v898 = vunpack.c.l.b16 %v824
        %v899 = vunpack.c.l.b16 %v826
        %v900 = vunpack.c.l.b16 %v827
        %v901 = vunpack.c.l.b16 %v829
        %v902 = vunpack.c.l.b16 %v830
        %v903 = vunpack.c.l.b16 %v832
        %v904 = vunpack.c.l.b16 %v833
        %v905 = vpack.c.b16 %v874, %v873
        %v906 = vpack.c.b16 %v876, %v875
        %v907 = vpack.c.b16 %v878, %v877
        %v908 = vpack.c.b16 %v880, %v879
        %v909 = vpack.c.b16 %v882, %v881
        %v910 = vpack.c.b16 %v884, %v883
        %v911 = vpack.c.b16 %v886, %v885
        %v912 = vpack.c.b16 %v888, %v887
        %v913 = vpack.c.b16 %v890, %v889
        %v914 = vpack.c.b16 %v892, %v891
        %v915 = vpack.c.b16 %v894, %v893
        %v916 = vpack.c.b16 %v896, %v895
        %v917 = vpack.c.b16 %v898, %v897
        %v918 = vpack.c.b16 %v900, %v899
        %v919 = vpack.c.b16 %v902, %v901
        %v920 = vpack.c.b16 %v904, %v903
        %v937 = vunpack.c.l.b16 %v789
        %v938 = vunpack.c.l.b16 %v792
        %v939 = vunpack.c.l.b16 %v795
        %v940 = vunpack.c.l.b16 %v798
        %v941 = vunpack.c.l.b16 %v801
        %v942 = vunpack.c.l.b16 %v804
        %v943 = vunpack.c.l.b16 %v807
        %v944 = vunpack.c.l.b16 %v810
        %v945 = vunpack.c.l.b16 %v813
        %v946 = vunpack.c.l.b16 %v816
        %v947 = vunpack.c.l.b16 %v819
        %v948 = vunpack.c.l.b16 %v822
        %v949 = vunpack.c.l.b16 %v825
        %v950 = vunpack.c.l.b16 %v828
        %v951 = vunpack.c.l.b16 %v831
        %v952 = vunpack.c.l.b16 %v834
        %v953 = vpack.c.b16 %v937, %v937
        %v954 = vpack.c.b16 %v938, %v938
        %v955 = vpack.c.b16 %v939, %v939
        %v956 = vpack.c.b16 %v940, %v940
        %v957 = vpack.c.b16 %v941, %v941
        %v958 = vpack.c.b16 %v942, %v942
        %v959 = vpack.c.b16 %v943, %v943
        %v960 = vpack.c.b16 %v944, %v944
        %v961 = vpack.c.b16 %v945, %v945
        %v962 = vpack.c.b16 %v946, %v946
        %v963 = vpack.c.b16 %v947, %v947
        %v964 = vpack.c.b16 %v948, %v948
        %v965 = vpack.c.b16 %v949, %v949
        %v966 = vpack.c.b16 %v950, %v950
        %v967 = vpack.c.b16 %v951, %v951
        %v968 = vpack.c.b16 %v952, %v952
        %vm969 = vsmask.f32 7424
        %v971 = vshrl.u32 %v905, 16
        %v973 = vshll.u32 %v905, 16
        %v975 = vrot.slane %v973, 1
        %v976 = vor.u32 %v971, %v975
        %v978 = vshll.u32 %v953, 16
        %v980 = vrot.slane %v978, 1
        %v981 = vsel %vm969, %v976, %v980
        %v983 = vshrl.u32 %v906, 16
        %v985 = vshll.u32 %v906, 16
        %v987 = vrot.slane %v985, 1
        %v988 = vor.u32 %v983, %v987
        %v990 = vshll.u32 %v954, 16
        %v992 = vrot.slane %v990, 1
        %v993 = vsel %vm969, %v988, %v992
        %v995 = vshrl.u32 %v907, 16
        %v997 = vshll.u32 %v907, 16
        %v999 = vrot.slane %v997, 1
        %v1000 = vor.u32 %v995, %v999
        %v1002 = vshll.u32 %v955, 16
        %v1004 = vrot.slane %v1002, 1
        %v1005 = vsel %vm969, %v1000, %v1004
        %v1007 = vshrl.u32 %v908, 16
        %v1009 = vshll.u32 %v908, 16
        %v1011 = vrot.slane %v1009, 1
        %v1012 = vor.u32 %v1007, %v1011
        %v1014 = vshll.u32 %v956, 16
        %v1016 = vrot.slane %v1014, 1
        %v1017 = vsel %vm969, %v1012, %v1016
        %v1019 = vshrl.u32 %v909, 16
        %v1021 = vshll.u32 %v909, 16
        %v1023 = vrot.slane %v1021, 1
        %v1024 = vor.u32 %v1019, %v1023
        %v1026 = vshll.u32 %v957, 16
        %v1028 = vrot.slane %v1026, 1
        %v1029 = vsel %vm969, %v1024, %v1028
        %v1031 = vshrl.u32 %v910, 16
        %v1033 = vshll.u32 %v910, 16
        %v1035 = vrot.slane %v1033, 1
        %v1036 = vor.u32 %v1031, %v1035
        %v1038 = vshll.u32 %v958, 16
        %v1040 = vrot.slane %v1038, 1
        %v1041 = vsel %vm969, %v1036, %v1040
        %v1043 = vshrl.u32 %v911, 16
        %v1045 = vshll.u32 %v911, 16
        %v1047 = vrot.slane %v1045, 1
        %v1048 = vor.u32 %v1043, %v1047
        %v1050 = vshll.u32 %v959, 16
        %v1052 = vrot.slane %v1050, 1
        %v1053 = vsel %vm969, %v1048, %v1052
        %v1055 = vshrl.u32 %v912, 16
        %v1057 = vshll.u32 %v912, 16
        %v1059 = vrot.slane %v1057, 1
        %v1060 = vor.u32 %v1055, %v1059
        %v1062 = vshll.u32 %v960, 16
        %v1064 = vrot.slane %v1062, 1
        %v1065 = vsel %vm969, %v1060, %v1064
        %v1067 = vshrl.u32 %v913, 16
        %v1069 = vshll.u32 %v913, 16
        %v1071 = vrot.slane %v1069, 1
        %v1072 = vor.u32 %v1067, %v1071
        %v1074 = vshll.u32 %v961, 16
        %v1076 = vrot.slane %v1074, 1
        %v1077 = vsel %vm969, %v1072, %v1076
        %v1079 = vshrl.u32 %v914, 16
        %v1081 = vshll.u32 %v914, 16
        %v1083 = vrot.slane %v1081, 1
        %v1084 = vor.u32 %v1079, %v1083
        %v1086 = vshll.u32 %v962, 16
        %v1088 = vrot.slane %v1086, 1
        %v1089 = vsel %vm969, %v1084, %v1088
        %v1091 = vshrl.u32 %v915, 16
        %v1093 = vshll.u32 %v915, 16
        %v1095 = vrot.slane %v1093, 1
        %v1096 = vor.u32 %v1091, %v1095
        %v1098 = vshll.u32 %v963, 16
        %v1100 = vrot.slane %v1098, 1
        %v1101 = vsel %vm969, %v1096, %v1100
        %v1103 = vshrl.u32 %v916, 16
        %v1105 = vshll.u32 %v916, 16
        %v1107 = vrot.slane %v1105, 1
        %v1108 = vor.u32 %v1103, %v1107
        %v1110 = vshll.u32 %v964, 16
        %v1112 = vrot.slane %v1110, 1
        %v1113 = vsel %vm969, %v1108, %v1112
        %v1115 = vshrl.u32 %v917, 16
        %v1117 = vshll.u32 %v917, 16
        %v1119 = vrot.slane %v1117, 1
        %v1120 = vor.u32 %v1115, %v1119
        %v1122 = vshll.u32 %v965, 16
        %v1124 = vrot.slane %v1122, 1
        %v1125 = vsel %vm969, %v1120, %v1124
        %v1127 = vshrl.u32 %v918, 16
        %v1129 = vshll.u32 %v918, 16
        %v1131 = vrot.slane %v1129, 1
        %v1132 = vor.u32 %v1127, %v1131
        %v1134 = vshll.u32 %v966, 16
        %v1136 = vrot.slane %v1134, 1
        %v1137 = vsel %vm969, %v1132, %v1136
        %v1139 = vshrl.u32 %v919, 16
        %v1141 = vshll.u32 %v919, 16
        %v1143 = vrot.slane %v1141, 1
        %v1144 = vor.u32 %v1139, %v1143
        %v1146 = vshll.u32 %v967, 16
        %v1148 = vrot.slane %v1146, 1
        %v1149 = vsel %vm969, %v1144, %v1148
        %v1151 = vshrl.u32 %v920, 16
        %v1153 = vshll.u32 %v920, 16
        %v1155 = vrot.slane %v1153, 1
        %v1156 = vor.u32 %v1151, %v1155
        %v1158 = vshll.u32 %v968, 16
        %v1160 = vrot.slane %v1158, 1
        %v1161 = vsel %vm969, %v1156, %v1160
        %1162 = vrot.lane.b32.xlu0 %v981, 4
        %v1163 = vpop.permute.xlu0 %1162
        %1164 = vrot.lane.b32.xlu0 %v993, 4
        %v1165 = vpop.permute.xlu0 %1164
        %1166 = vrot.lane.b32.xlu0 %v1005, 4
        %v1167 = vpop.permute.xlu0 %1166
        %1168 = vrot.lane.b32.xlu0 %v1017, 4
        %v1169 = vpop.permute.xlu0 %1168
        %1170 = vrot.lane.b32.xlu0 %v1029, 4
        %v1171 = vpop.permute.xlu0 %1170
        %1172 = vrot.lane.b32.xlu0 %v1041, 4
        %v1173 = vpop.permute.xlu0 %1172
        %1174 = vrot.lane.b32.xlu0 %v1053, 4
        %v1175 = vpop.permute.xlu0 %1174
        %1176 = vrot.lane.b32.xlu0 %v1065, 4
        %v1177 = vpop.permute.xlu0 %1176
        %1178 = vrot.lane.b32.xlu0 %v1077, 4
        %v1179 = vpop.permute.xlu0 %1178
        %1180 = vrot.lane.b32.xlu0 %v1089, 4
        %v1181 = vpop.permute.xlu0 %1180
        %1182 = vrot.lane.b32.xlu0 %v1101, 4
        %v1183 = vpop.permute.xlu0 %1182
        %1184 = vrot.lane.b32.xlu0 %v1113, 4
        %v1185 = vpop.permute.xlu0 %1184
        %1186 = vrot.lane.b32.xlu0 %v1125, 4
        %v1187 = vpop.permute.xlu0 %1186
        %1188 = vrot.lane.b32.xlu0 %v1137, 4
        %v1189 = vpop.permute.xlu0 %1188
        %1190 = vrot.lane.b32.xlu0 %v1149, 4
        %v1191 = vpop.permute.xlu0 %1190
        %1192 = vrot.lane.b32.xlu0 %v1161, 4
        %v1193 = vpop.permute.xlu0 %1192
        %vm1194 = vcmask 1046528
        %v1195 = vrot.slane %v905, 1
        %v1196 = vrot.slane %v953, 1
        %v1197 = vsel %vm1194, %v1195, %v1196
        %v1198 = vrot.slane %v906, 1
        %v1199 = vrot.slane %v954, 1
        %v1200 = vsel %vm1194, %v1198, %v1199
        %v1201 = vrot.slane %v907, 1
        %v1202 = vrot.slane %v955, 1
        %v1203 = vsel %vm1194, %v1201, %v1202
        %v1204 = vrot.slane %v908, 1
        %v1205 = vrot.slane %v956, 1
        %v1206 = vsel %vm1194, %v1204, %v1205
        %v1207 = vrot.slane %v909, 1
        %v1208 = vrot.slane %v957, 1
        %v1209 = vsel %vm1194, %v1207, %v1208
        %v1210 = vrot.slane %v910, 1
        %v1211 = vrot.slane %v958, 1
        %v1212 = vsel %vm1194, %v1210, %v1211
        %v1213 = vrot.slane %v911, 1
        %v1214 = vrot.slane %v959, 1
        %v1215 = vsel %vm1194, %v1213, %v1214
        %v1216 = vrot.slane %v912, 1
        %v1217 = vrot.slane %v960, 1
        %v1218 = vsel %vm1194, %v1216, %v1217
        %v1219 = vrot.slane %v913, 1
        %v1220 = vrot.slane %v961, 1
        %v1221 = vsel %vm1194, %v1219, %v1220
        %v1222 = vrot.slane %v914, 1
        %v1223 = vrot.slane %v962, 1
        %v1224 = vsel %vm1194, %v1222, %v1223
        %v1225 = vrot.slane %v915, 1
        %v1226 = vrot.slane %v963, 1
        %v1227 = vsel %vm1194, %v1225, %v1226
        %v1228 = vrot.slane %v916, 1
        %v1229 = vrot.slane %v964, 1
        %v1230 = vsel %vm1194, %v1228, %v1229
        %v1231 = vrot.slane %v917, 1
        %v1232 = vrot.slane %v965, 1
        %v1233 = vsel %vm1194, %v1231, %v1232
        %v1234 = vrot.slane %v918, 1
        %v1235 = vrot.slane %v966, 1
        %v1236 = vsel %vm1194, %v1234, %v1235
        %v1237 = vrot.slane %v919, 1
        %v1238 = vrot.slane %v967, 1
        %v1239 = vsel %vm1194, %v1237, %v1238
        %v1240 = vrot.slane %v920, 1
        %v1241 = vrot.slane %v968, 1
        %v1242 = vsel %vm1194, %v1240, %v1241
        %1243 = vrot.lane.b32.xlu0 %v1197, 8
        %v1244 = vpop.permute.xlu0 %1243
        %1245 = vrot.lane.b32.xlu0 %v1200, 8
        %v1246 = vpop.permute.xlu0 %1245
        %1247 = vrot.lane.b32.xlu0 %v1203, 8
        %v1248 = vpop.permute.xlu0 %1247
        %1249 = vrot.lane.b32.xlu0 %v1206, 8
        %v1250 = vpop.permute.xlu0 %1249
        %1251 = vrot.lane.b32.xlu0 %v1209, 8
        %v1252 = vpop.permute.xlu0 %1251
        %1253 = vrot.lane.b32.xlu0 %v1212, 8
        %v1254 = vpop.permute.xlu0 %1253
        %1255 = vrot.lane.b32.xlu0 %v1215, 8
        %v1256 = vpop.permute.xlu0 %1255
        %1257 = vrot.lane.b32.xlu0 %v1218, 8
        %v1258 = vpop.permute.xlu0 %1257
        %1259 = vrot.lane.b32.xlu0 %v1221, 8
        %v1260 = vpop.permute.xlu0 %1259
        %1261 = vrot.lane.b32.xlu0 %v1224, 8
        %v1262 = vpop.permute.xlu0 %1261
        %1263 = vrot.lane.b32.xlu0 %v1227, 8
        %v1264 = vpop.permute.xlu0 %1263
        %1265 = vrot.lane.b32.xlu0 %v1230, 8
        %v1266 = vpop.permute.xlu0 %1265
        %1267 = vrot.lane.b32.xlu0 %v1233, 8
        %v1268 = vpop.permute.xlu0 %1267
        %1269 = vrot.lane.b32.xlu0 %v1236, 8
        %v1270 = vpop.permute.xlu0 %1269
        %1271 = vrot.lane.b32.xlu0 %v1239, 8
        %v1272 = vpop.permute.xlu0 %1271
        %1273 = vrot.lane.b32.xlu0 %v1242, 8
        %v1274 = vpop.permute.xlu0 %1273
        %v1277 = vunpack.c.l.b16 %v835
        %v1278 = vunpack.c.l.b16 %v836
        %v1279 = vpack.c.b16 %v1278, %v1277
        %1280 = vrot.lane.b32.xlu0 %v906, 12
        %v1281 = vpop.permute.xlu0 %1280
        %1282 = vrot.lane.b32.xlu0 %v907, 12
        %v1283 = vpop.permute.xlu0 %1282
        %1284 = vrot.lane.b32.xlu0 %v908, 12
        %v1285 = vpop.permute.xlu0 %1284
        %1286 = vrot.lane.b32.xlu0 %v909, 12
        %v1287 = vpop.permute.xlu0 %1286
        %1288 = vrot.lane.b32.xlu0 %v910, 12
        %v1289 = vpop.permute.xlu0 %1288
        %1290 = vrot.lane.b32.xlu0 %v911, 12
        %v1291 = vpop.permute.xlu0 %1290
        %1292 = vrot.lane.b32.xlu0 %v912, 12
        %v1293 = vpop.permute.xlu0 %1292
        %1294 = vrot.lane.b32.xlu0 %v913, 12
        %v1295 = vpop.permute.xlu0 %1294
        %1296 = vrot.lane.b32.xlu0 %v914, 12
        %v1297 = vpop.permute.xlu0 %1296
        %1298 = vrot.lane.b32.xlu0 %v915, 12
        %v1299 = vpop.permute.xlu0 %1298
        %1300 = vrot.lane.b32.xlu0 %v916, 12
        %v1301 = vpop.permute.xlu0 %1300
        %1302 = vrot.lane.b32.xlu0 %v917, 12
        %v1303 = vpop.permute.xlu0 %1302
        %1304 = vrot.lane.b32.xlu0 %v918, 12
        %v1305 = vpop.permute.xlu0 %1304
        %1306 = vrot.lane.b32.xlu0 %v919, 12
        %v1307 = vpop.permute.xlu0 %1306
        %1308 = vrot.lane.b32.xlu0 %v920, 12
        %v1309 = vpop.permute.xlu0 %1308
        %1310 = vrot.lane.b32.xlu0 %v1279, 12
        %v1311 = vpop.permute.xlu0 %1310
        %v1313 = vunpack.c.l.b16 %v837
        %v1314 = vpack.c.b16 %v1313, %v1313
        %v1316 = vshrl.u32 %v1279, 16
        %v1318 = vshll.u32 %v1279, 16
        %v1320 = vrot.slane %v1318, 1
        %v1321 = vor.u32 %v1316, %v1320
        %v1323 = vshll.u32 %v1314, 16
        %v1325 = vrot.slane %v1323, 1
        %v1326 = vsel %vm969, %v1321, %v1325
        %1327 = vrot.lane.b32.xlu0 %v993, 16
        %v1328 = vpop.permute.xlu0 %1327
        %1329 = vrot.lane.b32.xlu0 %v1005, 16
        %v1330 = vpop.permute.xlu0 %1329
        %1331 = vrot.lane.b32.xlu0 %v1017, 16
        %v1332 = vpop.permute.xlu0 %1331
        %1333 = vrot.lane.b32.xlu0 %v1029, 16
        %v1334 = vpop.permute.xlu0 %1333
        %1335 = vrot.lane.b32.xlu0 %v1041, 16
        %v1336 = vpop.permute.xlu0 %1335
        %1337 = vrot.lane.b32.xlu0 %v1053, 16
        %v1338 = vpop.permute.xlu0 %1337
        %1339 = vrot.lane.b32.xlu0 %v1065, 16
        %v1340 = vpop.permute.xlu0 %1339
        %1341 = vrot.lane.b32.xlu0 %v1077, 16
        %v1342 = vpop.permute.xlu0 %1341
        %1343 = vrot.lane.b32.xlu0 %v1089, 16
        %v1344 = vpop.permute.xlu0 %1343
        %1345 = vrot.lane.b32.xlu0 %v1101, 16
        %v1346 = vpop.permute.xlu0 %1345
        %1347 = vrot.lane.b32.xlu0 %v1113, 16
        %v1348 = vpop.permute.xlu0 %1347
        %1349 = vrot.lane.b32.xlu0 %v1125, 16
        %v1350 = vpop.permute.xlu0 %1349
        %1351 = vrot.lane.b32.xlu0 %v1137, 16
        %v1352 = vpop.permute.xlu0 %1351
        %1353 = vrot.lane.b32.xlu0 %v1149, 16
        %v1354 = vpop.permute.xlu0 %1353
        %1355 = vrot.lane.b32.xlu0 %v1161, 16
        %v1356 = vpop.permute.xlu0 %1355
        %1357 = vrot.lane.b32.xlu0 %v1326, 16
        %v1358 = vpop.permute.xlu0 %1357
        %v1359 = vrot.slane %v1279, 1
        %v1360 = vrot.slane %v1314, 1
        %v1361 = vsel %vm1194, %v1359, %v1360
        %1362 = vrot.lane.b32.xlu0 %v1200, 20
        %v1363 = vpop.permute.xlu0 %1362
        %1364 = vrot.lane.b32.xlu0 %v1203, 20
        %v1365 = vpop.permute.xlu0 %1364
        %1366 = vrot.lane.b32.xlu0 %v1206, 20
        %v1367 = vpop.permute.xlu0 %1366
        %1368 = vrot.lane.b32.xlu0 %v1209, 20
        %v1369 = vpop.permute.xlu0 %1368
        %1370 = vrot.lane.b32.xlu0 %v1212, 20
        %v1371 = vpop.permute.xlu0 %1370
        %1372 = vrot.lane.b32.xlu0 %v1215, 20
        %v1373 = vpop.permute.xlu0 %1372
        %1374 = vrot.lane.b32.xlu0 %v1218, 20
        %v1375 = vpop.permute.xlu0 %1374
        %1376 = vrot.lane.b32.xlu0 %v1221, 20
        %v1377 = vpop.permute.xlu0 %1376
        %1378 = vrot.lane.b32.xlu0 %v1224, 20
        %v1379 = vpop.permute.xlu0 %1378
        %1380 = vrot.lane.b32.xlu0 %v1227, 20
        %v1381 = vpop.permute.xlu0 %1380
        %1382 = vrot.lane.b32.xlu0 %v1230, 20
        %v1383 = vpop.permute.xlu0 %1382
        %1384 = vrot.lane.b32.xlu0 %v1233, 20
        %v1385 = vpop.permute.xlu0 %1384
        %1386 = vrot.lane.b32.xlu0 %v1236, 20
        %v1387 = vpop.permute.xlu0 %1386
        %1388 = vrot.lane.b32.xlu0 %v1239, 20
        %v1389 = vpop.permute.xlu0 %1388
        %1390 = vrot.lane.b32.xlu0 %v1242, 20
        %v1391 = vpop.permute.xlu0 %1390
        %1392 = vrot.lane.b32.xlu0 %v1361, 20
        %v1393 = vpop.permute.xlu0 %1392
        %v1396 = vunpack.c.l.b16 %v838
        %v1397 = vunpack.c.l.b16 %v839
        %v1398 = vpack.c.b16 %v1397, %v1396
        %1399 = vrot.lane.b32.xlu0 %v907, 24
        %v1400 = vpop.permute.xlu0 %1399
        %1401 = vrot.lane.b32.xlu0 %v908, 24
        %v1402 = vpop.permute.xlu0 %1401
        %1403 = vrot.lane.b32.xlu0 %v909, 24
        %v1404 = vpop.permute.xlu0 %1403
        %1405 = vrot.lane.b32.xlu0 %v910, 24
        %v1406 = vpop.permute.xlu0 %1405
        %1407 = vrot.lane.b32.xlu0 %v911, 24
        %v1408 = vpop.permute.xlu0 %1407
        %1409 = vrot.lane.b32.xlu0 %v912, 24
        %v1410 = vpop.permute.xlu0 %1409
        %1411 = vrot.lane.b32.xlu0 %v913, 24
        %v1412 = vpop.permute.xlu0 %1411
        %1413 = vrot.lane.b32.xlu0 %v914, 24
        %v1414 = vpop.permute.xlu0 %1413
        %1415 = vrot.lane.b32.xlu0 %v915, 24
        %v1416 = vpop.permute.xlu0 %1415
        %1417 = vrot.lane.b32.xlu0 %v916, 24
        %v1418 = vpop.permute.xlu0 %1417
        %1419 = vrot.lane.b32.xlu0 %v917, 24
        %v1420 = vpop.permute.xlu0 %1419
        %1421 = vrot.lane.b32.xlu0 %v918, 24
        %v1422 = vpop.permute.xlu0 %1421
        %1423 = vrot.lane.b32.xlu0 %v919, 24
        %v1424 = vpop.permute.xlu0 %1423
        %1425 = vrot.lane.b32.xlu0 %v920, 24
        %v1426 = vpop.permute.xlu0 %1425
        %1427 = vrot.lane.b32.xlu0 %v1279, 24
        %v1428 = vpop.permute.xlu0 %1427
        %1429 = vrot.lane.b32.xlu0 %v1398, 24
        %v1430 = vpop.permute.xlu0 %1429
        %v1432 = vunpack.c.l.b16 %v840
        %v1433 = vpack.c.b16 %v1432, %v1432
        %v1435 = vshrl.u32 %v1398, 16
        %v1437 = vshll.u32 %v1398, 16
        %v1439 = vrot.slane %v1437, 1
        %v1440 = vor.u32 %v1435, %v1439
        %v1442 = vshll.u32 %v1433, 16
        %v1444 = vrot.slane %v1442, 1
        %v1445 = vsel %vm969, %v1440, %v1444
        %1446 = vrot.lane.b32.xlu0 %v1005, 28
        %v1447 = vpop.permute.xlu0 %1446
        %1448 = vrot.lane.b32.xlu0 %v1017, 28
        %v1449 = vpop.permute.xlu0 %1448
        %1450 = vrot.lane.b32.xlu0 %v1029, 28
        %v1451 = vpop.permute.xlu0 %1450
        %1452 = vrot.lane.b32.xlu0 %v1041, 28
        %v1453 = vpop.permute.xlu0 %1452
        %1454 = vrot.lane.b32.xlu0 %v1053, 28
        %v1455 = vpop.permute.xlu0 %1454
        %1456 = vrot.lane.b32.xlu0 %v1065, 28
        %v1457 = vpop.permute.xlu0 %1456
        %1458 = vrot.lane.b32.xlu0 %v1077, 28
        %v1459 = vpop.permute.xlu0 %1458
        %1460 = vrot.lane.b32.xlu0 %v1089, 28
        %v1461 = vpop.permute.xlu0 %1460
        %1462 = vrot.lane.b32.xlu0 %v1101, 28
        %v1463 = vpop.permute.xlu0 %1462
        %1464 = vrot.lane.b32.xlu0 %v1113, 28
        %v1465 = vpop.permute.xlu0 %1464
        %1466 = vrot.lane.b32.xlu0 %v1125, 28
        %v1467 = vpop.permute.xlu0 %1466
        %1468 = vrot.lane.b32.xlu0 %v1137, 28
        %v1469 = vpop.permute.xlu0 %1468
        %1470 = vrot.lane.b32.xlu0 %v1149, 28
        %v1471 = vpop.permute.xlu0 %1470
        %1472 = vrot.lane.b32.xlu0 %v1161, 28
        %v1473 = vpop.permute.xlu0 %1472
        %1474 = vrot.lane.b32.xlu0 %v1326, 28
        %v1475 = vpop.permute.xlu0 %1474
        %1476 = vrot.lane.b32.xlu0 %v1445, 28
        %v1477 = vpop.permute.xlu0 %1476
        %v1478 = vrot.slane %v1398, 1
        %v1479 = vrot.slane %v1433, 1
        %v1480 = vsel %vm1194, %v1478, %v1479
        %1481 = vrot.lane.b32.xlu0 %v1203, 32
        %v1482 = vpop.permute.xlu0 %1481
        %1483 = vrot.lane.b32.xlu0 %v1206, 32
        %v1484 = vpop.permute.xlu0 %1483
        %1485 = vrot.lane.b32.xlu0 %v1209, 32
        %v1486 = vpop.permute.xlu0 %1485
        %1487 = vrot.lane.b32.xlu0 %v1212, 32
        %v1488 = vpop.permute.xlu0 %1487
        %1489 = vrot.lane.b32.xlu0 %v1215, 32
        %v1490 = vpop.permute.xlu0 %1489
        %1491 = vrot.lane.b32.xlu0 %v1218, 32
        %v1492 = vpop.permute.xlu0 %1491
        %1493 = vrot.lane.b32.xlu0 %v1221, 32
        %v1494 = vpop.permute.xlu0 %1493
        %1495 = vrot.lane.b32.xlu0 %v1224, 32
        %v1496 = vpop.permute.xlu0 %1495
        %1497 = vrot.lane.b32.xlu0 %v1227, 32
        %v1498 = vpop.permute.xlu0 %1497
        %1499 = vrot.lane.b32.xlu0 %v1230, 32
        %v1500 = vpop.permute.xlu0 %1499
        %1501 = vrot.lane.b32.xlu0 %v1233, 32
        %v1502 = vpop.permute.xlu0 %1501
        %1503 = vrot.lane.b32.xlu0 %v1236, 32
        %v1504 = vpop.permute.xlu0 %1503
        %1505 = vrot.lane.b32.xlu0 %v1239, 32
        %v1506 = vpop.permute.xlu0 %1505
        %1507 = vrot.lane.b32.xlu0 %v1242, 32
        %v1508 = vpop.permute.xlu0 %1507
        %1509 = vrot.lane.b32.xlu0 %v1361, 32
        %v1510 = vpop.permute.xlu0 %1509
        %1511 = vrot.lane.b32.xlu0 %v1480, 32
        %v1512 = vpop.permute.xlu0 %1511
        %vm1513 = vcmask 31744
        %v1515 = vsel %vm1513, %v905, %v1163
        %v1517 = vsel %vm1513, %v906, %v1165
        %v1519 = vsel %vm1513, %v907, %v1167
        %v1521 = vsel %vm1513, %v908, %v1169
        %v1523 = vsel %vm1513, %v909, %v1171
        %v1525 = vsel %vm1513, %v910, %v1173
        %v1527 = vsel %vm1513, %v911, %v1175
        %v1529 = vsel %vm1513, %v912, %v1177
        %v1531 = vsel %vm1513, %v913, %v1179
        %v1533 = vsel %vm1513, %v914, %v1181
        %v1535 = vsel %vm1513, %v915, %v1183
        %v1537 = vsel %vm1513, %v916, %v1185
        %v1539 = vsel %vm1513, %v917, %v1187
        %v1541 = vsel %vm1513, %v918, %v1189
        %v1543 = vsel %vm1513, %v919, %v1191
        %v1545 = vsel %vm1513, %v920, %v1193
        %vm1546 = vcmask 64512
        %v1548 = vsel %vm1546, %v1515, %v1244
        %v1550 = vsel %vm1546, %v1517, %v1246
        %v1552 = vsel %vm1546, %v1519, %v1248
        %v1554 = vsel %vm1546, %v1521, %v1250
        %v1556 = vsel %vm1546, %v1523, %v1252
        %v1558 = vsel %vm1546, %v1525, %v1254
        %v1560 = vsel %vm1546, %v1527, %v1256
        %v1562 = vsel %vm1546, %v1529, %v1258
        %v1564 = vsel %vm1546, %v1531, %v1260
        %v1566 = vsel %vm1546, %v1533, %v1262
        %v1568 = vsel %vm1546, %v1535, %v1264
        %v1570 = vsel %vm1546, %v1537, %v1266
        %v1572 = vsel %vm1546, %v1539, %v1268
        %v1574 = vsel %vm1546, %v1541, %v1270
        %v1576 = vsel %vm1546, %v1543, %v1272
        %v1578 = vsel %vm1546, %v1545, %v1274
        %vm1579 = vcmask 97280
        %v1581 = vsel %vm1579, %v1548, %v1281
        %v1583 = vsel %vm1579, %v1550, %v1283
        %v1585 = vsel %vm1579, %v1552, %v1285
        %v1587 = vsel %vm1579, %v1554, %v1287
        %v1589 = vsel %vm1579, %v1556, %v1289
        %v1591 = vsel %vm1579, %v1558, %v1291
        %v1593 = vsel %vm1579, %v1560, %v1293
        %v1595 = vsel %vm1579, %v1562, %v1295
        %v1597 = vsel %vm1579, %v1564, %v1297
        %v1599 = vsel %vm1579, %v1566, %v1299
        %v1601 = vsel %vm1579, %v1568, %v1301
        %v1603 = vsel %vm1579, %v1570, %v1303
        %v1605 = vsel %vm1579, %v1572, %v1305
        %v1607 = vsel %vm1579, %v1574, %v1307
        %v1609 = vsel %vm1579, %v1576, %v1309
        %v1611 = vsel %vm1579, %v1578, %v1311
        %vm1612 = vcmask 130048
        %v1614 = vsel %vm1612, %v1581, %v1328
        %v1616 = vsel %vm1612, %v1583, %v1330
        %v1618 = vsel %vm1612, %v1585, %v1332
        %v1620 = vsel %vm1612, %v1587, %v1334
        %v1622 = vsel %vm1612, %v1589, %v1336
        %v1624 = vsel %vm1612, %v1591, %v1338
        %v1626 = vsel %vm1612, %v1593, %v1340
        %v1628 = vsel %vm1612, %v1595, %v1342
        %v1630 = vsel %vm1612, %v1597, %v1344
        %v1632 = vsel %vm1612, %v1599, %v1346
        %v1634 = vsel %vm1612, %v1601, %v1348
        %v1636 = vsel %vm1612, %v1603, %v1350
        %v1638 = vsel %vm1612, %v1605, %v1352
        %v1640 = vsel %vm1612, %v1607, %v1354
        %v1642 = vsel %vm1612, %v1609, %v1356
        %v1644 = vsel %vm1612, %v1611, %v1358
        %vm1645 = vcmask 162816
        %v1647 = vsel %vm1645, %v1614, %v1363
        %v1649 = vsel %vm1645, %v1616, %v1365
        %v1651 = vsel %vm1645, %v1618, %v1367
        %v1653 = vsel %vm1645, %v1620, %v1369
        %v1655 = vsel %vm1645, %v1622, %v1371
        %v1657 = vsel %vm1645, %v1624, %v1373
        %v1659 = vsel %vm1645, %v1626, %v1375
        %v1661 = vsel %vm1645, %v1628, %v1377
        %v1663 = vsel %vm1645, %v1630, %v1379
        %v1665 = vsel %vm1645, %v1632, %v1381
        %v1667 = vsel %vm1645, %v1634, %v1383
        %v1669 = vsel %vm1645, %v1636, %v1385
        %v1671 = vsel %vm1645, %v1638, %v1387
        %v1673 = vsel %vm1645, %v1640, %v1389
        %v1675 = vsel %vm1645, %v1642, %v1391
        %v1677 = vsel %vm1645, %v1644, %v1393
        %vm1678 = vcmask 195584
        %v1680 = vsel %vm1678, %v1647, %v1400
        %v1682 = vsel %vm1678, %v1649, %v1402
        %v1684 = vsel %vm1678, %v1651, %v1404
        %v1686 = vsel %vm1678, %v1653, %v1406
        %v1688 = vsel %vm1678, %v1655, %v1408
        %v1690 = vsel %vm1678, %v1657, %v1410
        %v1692 = vsel %vm1678, %v1659, %v1412
        %v1694 = vsel %vm1678, %v1661, %v1414
        %v1696 = vsel %vm1678, %v1663, %v1416
        %v1698 = vsel %vm1678, %v1665, %v1418
        %v1700 = vsel %vm1678, %v1667, %v1420
        %v1702 = vsel %vm1678, %v1669, %v1422
        %v1704 = vsel %vm1678, %v1671, %v1424
        %v1706 = vsel %vm1678, %v1673, %v1426
        %v1708 = vsel %vm1678, %v1675, %v1428
        %v1710 = vsel %vm1678, %v1677, %v1430
        %vm1711 = vcmask 228352
        %v1713 = vsel %vm1711, %v1680, %v1447
        %v1715 = vsel %vm1711, %v1682, %v1449
        %v1717 = vsel %vm1711, %v1684, %v1451
        %v1719 = vsel %vm1711, %v1686, %v1453
        %v1721 = vsel %vm1711, %v1688, %v1455
        %v1723 = vsel %vm1711, %v1690, %v1457
        %v1725 = vsel %vm1711, %v1692, %v1459
        %v1727 = vsel %vm1711, %v1694, %v1461
        %v1729 = vsel %vm1711, %v1696, %v1463
        %v1731 = vsel %vm1711, %v1698, %v1465
        %v1733 = vsel %vm1711, %v1700, %v1467
        %v1735 = vsel %vm1711, %v1702, %v1469
        %v1737 = vsel %vm1711, %v1704, %v1471
        %v1739 = vsel %vm1711, %v1706, %v1473
        %v1741 = vsel %vm1711, %v1708, %v1475
        %v1743 = vsel %vm1711, %v1710, %v1477
        %vm1744 = vcmask 261120
        %v1746 = vsel %vm1744, %v1713, %v1482
        %v1748 = vsel %vm1744, %v1715, %v1484
        %v1750 = vsel %vm1744, %v1717, %v1486
        %v1752 = vsel %vm1744, %v1719, %v1488
        %v1754 = vsel %vm1744, %v1721, %v1490
        %v1756 = vsel %vm1744, %v1723, %v1492
        %v1758 = vsel %vm1744, %v1725, %v1494
        %v1760 = vsel %vm1744, %v1727, %v1496
        %v1762 = vsel %vm1744, %v1729, %v1498
        %v1764 = vsel %vm1744, %v1731, %v1500
        %v1766 = vsel %vm1744, %v1733, %v1502
        %v1768 = vsel %vm1744, %v1735, %v1504
        %v1770 = vsel %vm1744, %v1737, %v1506
        %v1772 = vsel %vm1744, %v1739, %v1508
        %v1774 = vsel %vm1744, %v1741, %v1510
        %v1776 = vsel %vm1744, %v1743, %v1512
        %v1777 = vld [vmem:[%s1] sm:$0xf]
        %v1778 = vld [vmem:[%s2] sm:$0xff]
        %1780 = vset.pattern.permute.xlu0 0
        %1781 = vperm.xlu0 %1780, %v1778
        %v1782 = vpop.permute.xlu0 %1781
        %vm1784 = vcmask 293888
        %v1786 = vsel %vm1784, %v1777, 0
        %v1788 = vsel %vm1784, %v1746, 0
        %v1790 = vsel %vm1784, %v1748, 0
        %v1792 = vsel %vm1784, %v1750, 0
        %v1794 = vsel %vm1784, %v1752, 0
        %v1796 = vsel %vm1784, %v1754, 0
        %v1798 = vsel %vm1784, %v1756, 0
        %v1800 = vsel %vm1784, %v1758, 0
        %v1802 = vsel %vm1784, %v1760, 0
        %v1804 = vsel %vm1784, %v1762, 0
        %v1806 = vsel %vm1784, %v1764, 0
        %v1808 = vsel %vm1784, %v1766, 0
        %v1810 = vsel %vm1784, %v1768, 0
        %v1812 = vsel %vm1784, %v1770, 0
        %v1814 = vsel %vm1784, %v1772, 0
        %v1816 = vsel %vm1784, %v1774, 0
        %v1818 = vsel %vm1784, %v1776, 0
        %1820 = vmatprep.subr.bf16.mxu0 0
        %1821 = vmatpush1.bf16.xpose.msra.mxu0 %v1788
        %1822 = vmatprep.subr.bf16.mxu0 0
        %1823 = vmatpush1.bf16.xpose.msra.mxu0 %v1790
        %1824 = vmatprep.subr.bf16.mxu0 0
        %1825 = vmatpush1.bf16.xpose.msra.mxu0 %v1792
        %1826 = vmatprep.subr.bf16.mxu0 0
        %1827 = vmatpush1.bf16.xpose.msra.mxu0 %v1794
        %1828 = vmatprep.subr.bf16.mxu0 0
        %1829 = vmatpush1.bf16.xpose.msra.mxu0 %v1796
        %1830 = vmatprep.subr.bf16.mxu0 0
        %1831 = vmatpush1.bf16.xpose.msra.mxu0 %v1798
        %1832 = vmatprep.subr.bf16.mxu0 0
        %1833 = vmatpush1.bf16.xpose.msra.mxu0 %v1800
        %1834 = vmatprep.subr.bf16.mxu0 0
        %1835 = vmatpush1.bf16.xpose.msra.mxu0 %v1802
        %1836 = vmatprep.subr.bf16.mxu0 0
        %1837 = vmatpush1.bf16.xpose.msra.mxu0 %v1804
        %1838 = vmatprep.subr.bf16.mxu0 0
        %1839 = vmatpush1.bf16.xpose.msra.mxu0 %v1806
        %1840 = vmatprep.subr.bf16.mxu0 0
        %1841 = vmatpush1.bf16.xpose.msra.mxu0 %v1808
        %1842 = vmatprep.subr.bf16.mxu0 0
        %1843 = vmatpush1.bf16.xpose.msra.mxu0 %v1810
        %1844 = vmatprep.subr.bf16.mxu0 0
        %1845 = vmatpush1.bf16.xpose.msra.mxu0 %v1812
        %1846 = vmatprep.subr.bf16.mxu0 0
        %1847 = vmatpush1.bf16.xpose.msra.mxu0 %v1814
        %1848 = vmatprep.subr.bf16.mxu0 0
        %1849 = vmatpush1.bf16.xpose.msra.mxu0 %v1816
        %1850 = vmatprep.subr.bf16.mxu0 0
        %1851 = vmatpush1.bf16.xpose.msra.mxu0 %v1818
        %1852 = vmatprep.mubr.bf16.mxu0 0
        %1853 = vmatmul.mubr.bf16.gmra.mrb[0].mxu0 %v1786
        %v1854 = vpop.f32.mrb[0].mxu0
        %v1855 = vadd.f32 %v1782, %v1854
        %v1856 = vpop.f32.mrb[0].mxu0
        %v1857 = vadd.f32 %v1782, %v1856
        %v1858 = vpop.f32.mrb[0].mxu0
        %v1859 = vpop.f32.mrb[0].mxu0
        %1860 = vdwg.mxu0
        %vm1861 = vcmask 1047556
        %v1862 = vsel %vm1861, %v1855, 0.0
        %v1863 = vsel %vm1861, %v1857, 0.0
        %v1864 = vadd.f32 %v1862, %v1863
        %1865 = vadd.xlane.f32.xlu0 %v1864
        %v1866 = vpop.xlane.xlu0 %1865
        %v1867 = vmul.f32 %v1866, 0.00390625
        %v1868 = vmul.f32 %v1855, %v1855
        %v1869 = vmul.f32 %v1857, %v1857
        %v1870 = vsel %vm1861, %v1868, 0.0
        %v1871 = vsel %vm1861, %v1869, 0.0
        %v1872 = vadd.f32 %v1870, %v1871
        %1873 = vadd.xlane.f32.xlu0 %v1872
        %v1874 = vpop.xlane.xlu0 %1873
        %v1875 = vmul.f32 %v1874, 0.00390625
        %v1876 = vmul.f32 %v1867, %v1867
        %v1877 = vsub.f32 %v1875, %v1876
        %v1878 = vmax.f32 %v1877, 0.0
        %v1879 = vsub.f32 %v1855, %v1867
        %v1880 = vsub.f32 %v1857, %v1867
        %v1881 = vadd.f32 %v1878, 1e-05
        %v1882 = vrsqrt.pop %v1881
        %v1883 = vmul.f32 %v1879, %v1882
        %v1884 = vmul.f32 %v1880, %v1882
        %v1885 = vmax.f32 %v1883, 0.0
        %v1886 = vmax.f32 %v1884, 0.0
        %1887 = vst [vmem:[%s191] sm:$0xf] %v1855
        %1888 = vst [vmem:[%s191 + $0x8] sm:$0xf] %v1857
        %1889 = vst [vmem:[%s191] sm:$0xf0] %v1885
        %1890 = vst [vmem:[%s191 + $0x8] sm:$0xf0] %v1886
        %vm1891 = vcmask 1043456
        %v1892 = vsel %vm1891, %v1855, 0.0
        %v1893 = vsel %vm1891, %v1857, 0.0
        %v1894 = vadd.f32 %v1892, %v1893
        %1895 = vadd.xlane.f32.xlu0 %v1894
        %v1896 = vpop.xlane.xlu0 %1895
        %v1897 = vsel %vm1891, %v1868, 0.0
        %v1898 = vsel %vm1891, %v1869, 0.0
        %v1899 = vadd.f32 %v1897, %v1898
        %1900 = vadd.xlane.f32.xlu0 %v1899
        %v1901 = vpop.xlane.xlu0 %1900
        %vm1902 = vcmask 7168
        %v1903 = vsel %vm1902, %v1896, %v1901
        %vm1904 = vcmask 11264
        %1905 = vst.msk [vmem:[%s206] sm:$0xf] %vm1904, %v1903
        %s1906 = sand.u32 %s95, 1
        %s1907 = scalar_lea.sflag [#allocation4], %s1906
        %s1908 = sand.u32 %s95, 1
        %s1909 = smul.addr %s1908, 16
        %s1910 = scalar_lea.vmem [#allocation3], %s1909
        %p1911 = scmp.lt.s32.totalorder %s19, 1
        %s1912 = scalar_select %p1911, %s19, 1
        %s1913 = smul.addr %s1912, 4
        %s1914 = scalar_lea.vmem %s4, %s1913
        // Predicated region
        $region33: #{tpu_custom_call.1} parent=31 // pred_check
          %p1915 = pneg %p105
        $region34: #{tpu_custom_call.1} parent=31 // pred_check_branch
          %1917 = sbr.rel (%p1915) target = $region36
        $region35: #{tpu_custom_call.1} parent=31 // pred_region
          %s1919 = ssub.s32 256, 256
          %1920 = vsyncadd %s1907, %s1919
          %s1921 = smul.addr %s19, 2
          %s1922 = smul.addr %s1921, 128
          %s1923 = scalar_lea.hbm %s3, %s1922
          %s1925 = sshll.u32 %s1910, 4
          %s1926 = int_to_ptr.vmem [resolvable:$true] %s1925
          %1928 = dma.vmem_to_hbm [thread:$0]  %s1926, 256, %s1923, %s1907
        $region36: #{tpu_custom_call.1} parent=31 // pred_fallthru
          _
        // Predicated region
        $region37: #{tpu_custom_call.1} parent=31 // pred_check
          %p1929 = pneg %p131
        $region38: #{tpu_custom_call.1} parent=31 // pred_check_branch
          %1931 = sbr.rel (%p1929) target = $region40
        $region39: #{tpu_custom_call.1} parent=31 // pred_region
          _
        $region40: #{tpu_custom_call.1} parent=31 // pred_fallthru
          _
      $region32: #{tpu_custom_call.1} parent=5 // pred_fallthru
        _
      %p1932 = scmp.le.s32.totalorder 2, %s14
      // Predicated region
      $region41: #{tpu_custom_call.1} parent=5 // pred_check
        %p1933 = pneg %p1932
      $region42: #{tpu_custom_call.1} parent=5 // pred_check_branch
        %1935 = sbr.rel (%p1933) target = $region44
      $region43: #{tpu_custom_call.1} parent=5 // pred_region
        %s1936 = ssub.s32 %s14, 2
        // Predicated region
        $region45: #{tpu_custom_call.1} parent=43 // pred_check
          %p1937 = pneg %p111
        $region46: #{tpu_custom_call.1} parent=43 // pred_check_branch
          %1939 = sbr.rel (%p1937) target = $region48
        $region47: #{tpu_custom_call.1} parent=43 // pred_region
          %s1940 = sand.u32 %s96, 1
          %s1941 = scalar_lea.sflag [#allocation4], %s1940
          %s1942 = sand.u32 %s96, 1
          %s1943 = smul.addr %s1942, 16
          %s1944 = scalar_lea.vmem [#allocation3], %s1943
          %1945 = dma.done %s1941, 256
        $region48: #{tpu_custom_call.1} parent=43 // pred_fallthru
          _
        // Predicated region
        $region49: #{tpu_custom_call.1} parent=43 // pred_check
          %p1946 = pneg %p137
        $region50: #{tpu_custom_call.1} parent=43 // pred_check_branch
          %1948 = sbr.rel (%p1946) target = $region52
        $region51: #{tpu_custom_call.1} parent=43 // pred_region
          %p1949 = scmp.lt.s32.totalorder %s20, 1
          %s1950 = scalar_select %p1949, %s20, 1
          %s1951 = smul.addr %s1950, 4
          %s1952 = scalar_lea.vmem %s4, %s1951
        $region52: #{tpu_custom_call.1} parent=43 // pred_fallthru
          _
      $region44: #{tpu_custom_call.1} parent=5 // pred_fallthru
        _
    $region6: #{tpu_custom_call.1} parent=1 // loop_footer
      %s18 = sadd.s32 1, %s14
    $region7: #{tpu_custom_call.1} parent=1 // loop_footer_branch
      %13 = sbr.rel target = $region3
    $region8: #{tpu_custom_call.1} parent=1 // loop_exit
      _
    %1953 = vsyncpa [#allocation4], 1
    %s1954 = scalar_lea.sflag [#allocation4], 1
    %1955 = vsyncpa %s1954, 1

</llo_original>
